<compile_context>
chip_gen: v7x
topology: tpu7x:2x2x1
jax: 0.10.0
libtpu: 0.0.40
codegen_flags: <defaults>
</compile_context>

<pallas_src>
import functools

import jax
import jax.numpy as jnp
from jax import lax
from jax.experimental import pallas as pl
from jax.experimental.pallas import tpu as pltpu


def lstm_kernel(x_ref, w_ih_ref, w_hh_ref, b_ref, fc_w_ref, fc_b_ref,
                out_ref, gx_ref, *, T, H, unroll):
    # x_ref:    (T, B, D)   bf16, time-major
    # w_ih_ref: (D, 4H)     bf16, gate order [i, f, o, g]
    # w_hh_ref: (H, 4H)     bf16, gate order [i, f, o, g]
    # b_ref:    (1, 4H)     f32  (= b_ih + b_hh), gate order [i, f, o, g]
    # fc_w_ref: (H, C)      bf16
    # fc_b_ref: (1, C)      f32
    # out_ref:  (B, C)      f32
    # gx_ref:   (T, B, 4H)  bf16 scratch — hoisted input projection (+ bias)
    B = x_ref.shape[1]

    w_ih = w_ih_ref[...]   # (D, 4H) bf16
    w_hh = w_hh_ref[...]   # (H, 4H) bf16, resident across the whole recurrence
    bias = jnp.broadcast_to(b_ref[...], (B, 4 * H))  # hoisted broadcast (not CSE'd in loops)

    # --- Hoisted input projection: independent of the recurrence, so the T MXU pushes
    # pipeline back-to-back.  Stored (T, B, 4H) so every per-step access is a tile-aligned
    # leading-axis view, and in bf16 to halve the only O(T*B*4H) VMEM consumer.
    def proj(t, carry):
        gx_ref[t] = (
            jnp.dot(x_ref[t], w_ih, preferred_element_type=jnp.float32) + bias
        ).astype(jnp.bfloat16)
        return carry

    lax.fori_loop(0, T, proj, 0, unroll=True)

    def gate_slabs(gates):
        # gate order [i, f, o, g]: one sigmoid over the contiguous 3H slab, one tanh over H.
        sig = jax.nn.sigmoid(gates[:, : 3 * H])
        return (sig[:, 0 * H:1 * H], sig[:, 1 * H:2 * H], sig[:, 2 * H:3 * H],
                jnp.tanh(gates[:, 3 * H:4 * H]))

    # --- Peeled t = 0 (h0 = c0 = 0): gates_0 = gx[0]; skips one h@W_hh matmul and f_g*c.
    g0 = gx_ref[0].astype(jnp.float32)          # (B, 4H)
    i0, _, o0, gg0 = gate_slabs(g0)
    c1 = i0 * gg0                               # f32 cell state
    h1 = (o0 * jnp.tanh(c1)).astype(jnp.bfloat16)

    def step(t, carry):
        h, c = carry  # h: (B, H) bf16 (halved vreg footprint), c: (B, H) f32
        gates = (
            jnp.dot(h, w_hh, preferred_element_type=jnp.float32)
            + gx_ref[t].astype(jnp.float32)
        )  # (B, 4H) f32 — all gate elementwise math stays in f32
        i_g, f_g, o_g, g_g = gate_slabs(gates)
        c_new = f_g * c + i_g * g_g
        h_new = (o_g * jnp.tanh(c_new)).astype(jnp.bfloat16)
        return (h_new, c_new)

    # Capped unroll: full unroll for small T (cross-step MXU/EUP/VPU interleave), bounded
    # for long sequences to avoid blowing the 64-vreg budget.
    h_final, _ = lax.fori_loop(1, T, step, (h1, c1), unroll=unroll)

    # --- fc + softmax(dim=1).  C=4 (< 128 lanes): masked vst, negligible at this size.
    logits = (
        jnp.dot(h_final, fc_w_ref[...], preferred_element_type=jnp.float32)
        + fc_b_ref[...]
    )  # (B, C) f32
    m = jnp.max(logits, axis=1, keepdims=True)
    e = jnp.exp(logits - m)
    inv = pl.reciprocal(jnp.sum(e, axis=1, keepdims=True), approx=False)  # exact softmax
    out_ref[...] = e * inv


def _reorder_gate_rows(a, H):
    """PyTorch LSTM gate order [i, f, g, o] -> kernel order [i, f, o, g] along axis 0."""
    return jnp.concatenate([a[: 2 * H], a[3 * H: 4 * H], a[2 * H: 3 * H]], axis=0)


def lstm_forward(x, w_ih, w_hh, b_ih, b_hh, fc_w, fc_b):
    """x: (B, T, D) batch_first float32 -> (B, num_classes) softmax probabilities."""
    B, T, D = x.shape
    H = w_hh.shape[1]
    C = fc_w.shape[0]

    # Time-major (T, B, D); bf16 MXU operands.
    x_tm = jnp.transpose(x, (1, 0, 2)).astype(jnp.bfloat16)

    # Reorder gate rows to [i, f, o, g]; pre-transpose so the kernel never transposes.
    w_ih_t = jnp.transpose(_reorder_gate_rows(w_ih, H)).astype(jnp.bfloat16)  # (D, 4H)
    w_hh_t = jnp.transpose(_reorder_gate_rows(w_hh, H)).astype(jnp.bfloat16)  # (H, 4H)
    bias = _reorder_gate_rows((b_ih + b_hh), H).reshape(1, 4 * H).astype(jnp.float32)

    fc_w_t = jnp.transpose(fc_w).astype(jnp.bfloat16)  # (H, C)
    fc_b2 = fc_b.reshape(1, C).astype(jnp.float32)

    # Full unroll while the recurrence is short; cap at 8 once T grows (vreg pressure).
    unroll_amt = max(1, min(T - 1, 8))

    kernel = functools.partial(lstm_kernel, T=T, H=H, unroll=unroll_amt)
    vmem = pl.BlockSpec(memory_space=pltpu.MemorySpace.VMEM)

    return pl.pallas_call(
        kernel,
        out_shape=jax.ShapeDtypeStruct((B, C), jnp.float32),
        in_specs=[vmem, vmem, vmem, vmem, vmem, vmem],
        out_specs=vmem,
        scratch_shapes=[pltpu.VMEM((T, B, 4 * H), jnp.bfloat16)],
    )(x_tm, w_ih_t, w_hh_t, bias, fc_w_t, fc_b2)


def _uniform(key, shape, bound):
    return jax.random.uniform(key, shape, jnp.float32, minval=-bound, maxval=bound)


def _lstm_reference(x, w_ih, w_hh, b_ih, b_hh, fc_w, fc_b):
    """Pure-JAX f32 reference matching the PyTorch module (eval mode)."""
    B, T, D = x.shape
    H = w_hh.shape[1]
    h = jnp.zeros((B, H), jnp.float32)
    c = jnp.zeros((B, H), jnp.float32)
    for t in range(T):
        gates = x[:, t, :] @ w_ih.T + h @ w_hh.T + b_ih + b_hh
        i_g = jax.nn.sigmoid(gates[:, 0 * H:1 * H])
        f_g = jax.nn.sigmoid(gates[:, 1 * H:2 * H])
        g_g = jnp.tanh(gates[:, 2 * H:3 * H])
        o_g = jax.nn.sigmoid(gates[:, 3 * H:4 * H])
        c = f_g * c + i_g * g_g
        h = o_g * jnp.tanh(c)
    logits = h @ fc_w.T + fc_b
    return jax.nn.softmax(logits, axis=1)


if __name__ == "__main__":
    # Small shapes consistent with the module's forward:
    B, T, D, H, C = 2, 8, 16, 32, 4

    key = jax.random.PRNGKey(0)
    kx, k1, k2, k3, k4, k5, k6 = jax.random.split(key, 7)

    x = jax.random.normal(kx, (B, T, D), jnp.float32)

    # PyTorch-style uniform(-1/sqrt(H), 1/sqrt(H)) init for LSTM and Linear params.
    kbound = 1.0 / jnp.sqrt(jnp.float32(H))
    w_ih = _uniform(k1, (4 * H, D), kbound)
    w_hh = _uniform(k2, (4 * H, H), kbound)
    b_ih = _uniform(k3, (4 * H,), kbound)
    b_hh = _uniform(k4, (4 * H,), kbound)
    fc_w = _uniform(k5, (C, H), kbound)
    fc_b = _uniform(k6, (C,), kbound)

    out = lstm_forward(x, w_ih, w_hh, b_ih, b_hh, fc_w, fc_b)
    out = jax.block_until_ready(out)

    assert out.shape == (B, C)
    # rows of a softmax sum to 1
    assert bool(jnp.all(jnp.abs(jnp.sum(out, axis=1) - 1.0) < 1e-2))
    # compare against pure-JAX f32 reference (loose tol: bf16 MXU operands / bf16 gx & h)
    ref = _lstm_reference(x, w_ih, w_hh, b_ih, b_hh, fc_w, fc_b)
    assert bool(jnp.all(jnp.abs(out - ref) < 5e-2))
    print("KERNEL_OK")
</pallas_src>

<mosaic_0001>
module attributes {stable_mosaic.version = 11 : i64} {
  func.func @lstm_kernel(%arg0: memref<8x2x16xbf16, #tpu.memory_space<vmem>>, %arg1: memref<16x128xbf16, #tpu.memory_space<vmem>>, %arg2: memref<32x128xbf16, #tpu.memory_space<vmem>>, %arg3: memref<1x128xf32, #tpu.memory_space<vmem>>, %arg4: memref<32x4xbf16, #tpu.memory_space<vmem>>, %arg5: memref<1x4xf32, #tpu.memory_space<vmem>>, %arg6: memref<2x4xf32, #tpu.memory_space<vmem>>, %arg7: memref<8x2x128xbf16, #tpu.memory_space<vmem>>) attributes {dimension_semantics = [], scalar_prefetch = 0 : i64, scratch_operands = 1 : i64, tpu.core_type = #tpu.core_type<tc>} {
    %c0 = arith.constant 0 : index
    %c0_0 = arith.constant 0 : index
    %0 = vector.load %arg1[%c0, %c0_0] : memref<16x128xbf16, #tpu.memory_space<vmem>>, vector<16x128xbf16>
    %c0_1 = arith.constant 0 : index
    %c0_2 = arith.constant 0 : index
    %1 = vector.load %arg2[%c0_1, %c0_2] : memref<32x128xbf16, #tpu.memory_space<vmem>>, vector<32x128xbf16>
    %c0_3 = arith.constant 0 : index
    %c0_4 = arith.constant 0 : index
    %2 = vector.load %arg3[%c0_3, %c0_4] : memref<1x128xf32, #tpu.memory_space<vmem>>, vector<1x128xf32>
    %3 = vector.shape_cast %2 : vector<1x128xf32> to vector<1x128xf32>
    %4 = vector.broadcast %3 : vector<1x128xf32> to vector<2x128xf32>
    %c0_i32 = arith.constant 0 : i32
    %5 = arith.index_cast %c0_i32 : i32 to index
    %c0_5 = arith.constant 0 : index
    %c0_6 = arith.constant 0 : index
    %6 = vector.load %arg0[%5, %c0_5, %c0_6] : memref<8x2x16xbf16, #tpu.memory_space<vmem>>, vector<1x2x16xbf16>
    %7 = vector.shape_cast %6 : vector<1x2x16xbf16> to vector<2x16xbf16>
    %cst = arith.constant dense<0.000000e+00> : vector<2x128xf32>
    %8 = tpu.matmul %7, %0, %cst {dimension_numbers = #tpu.dot_dimension_numbers<[1], [0], [0], [1], [0, 0, 1, 1], [], []>} : vector<2x16xbf16>, vector<16x128xbf16>, vector<2x128xf32> -> vector<2x128xf32>
    %9 = arith.addf %8, %4 : vector<2x128xf32>
    %10 = arith.truncf %9 : vector<2x128xf32> to vector<2x128xbf16>
    %11 = arith.index_cast %c0_i32 : i32 to index
    %c0_7 = arith.constant 0 : index
    %c0_8 = arith.constant 0 : index
    %12 = vector.load %arg7[%11, %c0_7, %c0_8] : memref<8x2x128xbf16, #tpu.memory_space<vmem>>, vector<1x2x128xbf16>
    %13 = vector.shape_cast %12 : vector<1x2x128xbf16> to vector<2x128xbf16>
    %14 = vector.shape_cast %10 : vector<2x128xbf16> to vector<1x2x128xbf16>
    tpu.vector_store %arg7[%11, %c0_7, %c0_8], %14 {strides = array<i32>} : memref<8x2x128xbf16, #tpu.memory_space<vmem>>, vector<1x2x128xbf16>,
    %c1_i32 = arith.constant 1 : i32
    %15 = arith.index_cast %c1_i32 : i32 to index
    %c0_9 = arith.constant 0 : index
    %c0_10 = arith.constant 0 : index
    %16 = vector.load %arg0[%15, %c0_9, %c0_10] : memref<8x2x16xbf16, #tpu.memory_space<vmem>>, vector<1x2x16xbf16>
    %17 = vector.shape_cast %16 : vector<1x2x16xbf16> to vector<2x16xbf16>
    %cst_11 = arith.constant dense<0.000000e+00> : vector<2x128xf32>
    %18 = tpu.matmul %17, %0, %cst_11 {dimension_numbers = #tpu.dot_dimension_numbers<[1], [0], [0], [1], [0, 0, 1, 1], [], []>} : vector<2x16xbf16>, vector<16x128xbf16>, vector<2x128xf32> -> vector<2x128xf32>
    %19 = arith.addf %18, %4 : vector<2x128xf32>
    %20 = arith.truncf %19 : vector<2x128xf32> to vector<2x128xbf16>
    %21 = arith.index_cast %c1_i32 : i32 to index
    %c0_12 = arith.constant 0 : index
    %c0_13 = arith.constant 0 : index
    %22 = vector.load %arg7[%21, %c0_12, %c0_13] : memref<8x2x128xbf16, #tpu.memory_space<vmem>>, vector<1x2x128xbf16>
    %23 = vector.shape_cast %22 : vector<1x2x128xbf16> to vector<2x128xbf16>
    %24 = vector.shape_cast %20 : vector<2x128xbf16> to vector<1x2x128xbf16>
    tpu.vector_store %arg7[%21, %c0_12, %c0_13], %24 {strides = array<i32>} : memref<8x2x128xbf16, #tpu.memory_space<vmem>>, vector<1x2x128xbf16>,
    %c2_i32 = arith.constant 2 : i32
    %25 = arith.index_cast %c2_i32 : i32 to index
    %c0_14 = arith.constant 0 : index
    %c0_15 = arith.constant 0 : index
    %26 = vector.load %arg0[%25, %c0_14, %c0_15] : memref<8x2x16xbf16, #tpu.memory_space<vmem>>, vector<1x2x16xbf16>
    %27 = vector.shape_cast %26 : vector<1x2x16xbf16> to vector<2x16xbf16>
    %cst_16 = arith.constant dense<0.000000e+00> : vector<2x128xf32>
    %28 = tpu.matmul %27, %0, %cst_16 {dimension_numbers = #tpu.dot_dimension_numbers<[1], [0], [0], [1], [0, 0, 1, 1], [], []>} : vector<2x16xbf16>, vector<16x128xbf16>, vector<2x128xf32> -> vector<2x128xf32>
    %29 = arith.addf %28, %4 : vector<2x128xf32>
    %30 = arith.truncf %29 : vector<2x128xf32> to vector<2x128xbf16>
    %31 = arith.index_cast %c2_i32 : i32 to index
    %c0_17 = arith.constant 0 : index
    %c0_18 = arith.constant 0 : index
    %32 = vector.load %arg7[%31, %c0_17, %c0_18] : memref<8x2x128xbf16, #tpu.memory_space<vmem>>, vector<1x2x128xbf16>
    %33 = vector.shape_cast %32 : vector<1x2x128xbf16> to vector<2x128xbf16>
    %34 = vector.shape_cast %30 : vector<2x128xbf16> to vector<1x2x128xbf16>
    tpu.vector_store %arg7[%31, %c0_17, %c0_18], %34 {strides = array<i32>} : memref<8x2x128xbf16, #tpu.memory_space<vmem>>, vector<1x2x128xbf16>,
    %c3_i32 = arith.constant 3 : i32
    %35 = arith.index_cast %c3_i32 : i32 to index
    %c0_19 = arith.constant 0 : index
    %c0_20 = arith.constant 0 : index
    %36 = vector.load %arg0[%35, %c0_19, %c0_20] : memref<8x2x16xbf16, #tpu.memory_space<vmem>>, vector<1x2x16xbf16>
    %37 = vector.shape_cast %36 : vector<1x2x16xbf16> to vector<2x16xbf16>
    %cst_21 = arith.constant dense<0.000000e+00> : vector<2x128xf32>
    %38 = tpu.matmul %37, %0, %cst_21 {dimension_numbers = #tpu.dot_dimension_numbers<[1], [0], [0], [1], [0, 0, 1, 1], [], []>} : vector<2x16xbf16>, vector<16x128xbf16>, vector<2x128xf32> -> vector<2x128xf32>
    %39 = arith.addf %38, %4 : vector<2x128xf32>
    %40 = arith.truncf %39 : vector<2x128xf32> to vector<2x128xbf16>
    %41 = arith.index_cast %c3_i32 : i32 to index
    %c0_22 = arith.constant 0 : index
    %c0_23 = arith.constant 0 : index
    %42 = vector.load %arg7[%41, %c0_22, %c0_23] : memref<8x2x128xbf16, #tpu.memory_space<vmem>>, vector<1x2x128xbf16>
    %43 = vector.shape_cast %42 : vector<1x2x128xbf16> to vector<2x128xbf16>
    %44 = vector.shape_cast %40 : vector<2x128xbf16> to vector<1x2x128xbf16>
    tpu.vector_store %arg7[%41, %c0_22, %c0_23], %44 {strides = array<i32>} : memref<8x2x128xbf16, #tpu.memory_space<vmem>>, vector<1x2x128xbf16>,
    %c4_i32 = arith.constant 4 : i32
    %45 = arith.index_cast %c4_i32 : i32 to index
    %c0_24 = arith.constant 0 : index
    %c0_25 = arith.constant 0 : index
    %46 = vector.load %arg0[%45, %c0_24, %c0_25] : memref<8x2x16xbf16, #tpu.memory_space<vmem>>, vector<1x2x16xbf16>
    %47 = vector.shape_cast %46 : vector<1x2x16xbf16> to vector<2x16xbf16>
    %cst_26 = arith.constant dense<0.000000e+00> : vector<2x128xf32>
    %48 = tpu.matmul %47, %0, %cst_26 {dimension_numbers = #tpu.dot_dimension_numbers<[1], [0], [0], [1], [0, 0, 1, 1], [], []>} : vector<2x16xbf16>, vector<16x128xbf16>, vector<2x128xf32> -> vector<2x128xf32>
    %49 = arith.addf %48, %4 : vector<2x128xf32>
    %50 = arith.truncf %49 : vector<2x128xf32> to vector<2x128xbf16>
    %51 = arith.index_cast %c4_i32 : i32 to index
    %c0_27 = arith.constant 0 : index
    %c0_28 = arith.constant 0 : index
    %52 = vector.load %arg7[%51, %c0_27, %c0_28] : memref<8x2x128xbf16, #tpu.memory_space<vmem>>, vector<1x2x128xbf16>
    %53 = vector.shape_cast %52 : vector<1x2x128xbf16> to vector<2x128xbf16>
    %54 = vector.shape_cast %50 : vector<2x128xbf16> to vector<1x2x128xbf16>
    tpu.vector_store %arg7[%51, %c0_27, %c0_28], %54 {strides = array<i32>} : memref<8x2x128xbf16, #tpu.memory_space<vmem>>, vector<1x2x128xbf16>,
    %c5_i32 = arith.constant 5 : i32
    %55 = arith.index_cast %c5_i32 : i32 to index
    %c0_29 = arith.constant 0 : index
    %c0_30 = arith.constant 0 : index
    %56 = vector.load %arg0[%55, %c0_29, %c0_30] : memref<8x2x16xbf16, #tpu.memory_space<vmem>>, vector<1x2x16xbf16>
    %57 = vector.shape_cast %56 : vector<1x2x16xbf16> to vector<2x16xbf16>
    %cst_31 = arith.constant dense<0.000000e+00> : vector<2x128xf32>
    %58 = tpu.matmul %57, %0, %cst_31 {dimension_numbers = #tpu.dot_dimension_numbers<[1], [0], [0], [1], [0, 0, 1, 1], [], []>} : vector<2x16xbf16>, vector<16x128xbf16>, vector<2x128xf32> -> vector<2x128xf32>
    %59 = arith.addf %58, %4 : vector<2x128xf32>
    %60 = arith.truncf %59 : vector<2x128xf32> to vector<2x128xbf16>
    %61 = arith.index_cast %c5_i32 : i32 to index
    %c0_32 = arith.constant 0 : index
    %c0_33 = arith.constant 0 : index
    %62 = vector.load %arg7[%61, %c0_32, %c0_33] : memref<8x2x128xbf16, #tpu.memory_space<vmem>>, vector<1x2x128xbf16>
    %63 = vector.shape_cast %62 : vector<1x2x128xbf16> to vector<2x128xbf16>
    %64 = vector.shape_cast %60 : vector<2x128xbf16> to vector<1x2x128xbf16>
    tpu.vector_store %arg7[%61, %c0_32, %c0_33], %64 {strides = array<i32>} : memref<8x2x128xbf16, #tpu.memory_space<vmem>>, vector<1x2x128xbf16>,
    %c6_i32 = arith.constant 6 : i32
    %65 = arith.index_cast %c6_i32 : i32 to index
    %c0_34 = arith.constant 0 : index
    %c0_35 = arith.constant 0 : index
    %66 = vector.load %arg0[%65, %c0_34, %c0_35] : memref<8x2x16xbf16, #tpu.memory_space<vmem>>, vector<1x2x16xbf16>
    %67 = vector.shape_cast %66 : vector<1x2x16xbf16> to vector<2x16xbf16>
    %cst_36 = arith.constant dense<0.000000e+00> : vector<2x128xf32>
    %68 = tpu.matmul %67, %0, %cst_36 {dimension_numbers = #tpu.dot_dimension_numbers<[1], [0], [0], [1], [0, 0, 1, 1], [], []>} : vector<2x16xbf16>, vector<16x128xbf16>, vector<2x128xf32> -> vector<2x128xf32>
    %69 = arith.addf %68, %4 : vector<2x128xf32>
    %70 = arith.truncf %69 : vector<2x128xf32> to vector<2x128xbf16>
    %71 = arith.index_cast %c6_i32 : i32 to index
    %c0_37 = arith.constant 0 : index
    %c0_38 = arith.constant 0 : index
    %72 = vector.load %arg7[%71, %c0_37, %c0_38] : memref<8x2x128xbf16, #tpu.memory_space<vmem>>, vector<1x2x128xbf16>
    %73 = vector.shape_cast %72 : vector<1x2x128xbf16> to vector<2x128xbf16>
    %74 = vector.shape_cast %70 : vector<2x128xbf16> to vector<1x2x128xbf16>
    tpu.vector_store %arg7[%71, %c0_37, %c0_38], %74 {strides = array<i32>} : memref<8x2x128xbf16, #tpu.memory_space<vmem>>, vector<1x2x128xbf16>,
    %c7_i32 = arith.constant 7 : i32
    %75 = arith.index_cast %c7_i32 : i32 to index
    %c0_39 = arith.constant 0 : index
    %c0_40 = arith.constant 0 : index
    %76 = vector.load %arg0[%75, %c0_39, %c0_40] : memref<8x2x16xbf16, #tpu.memory_space<vmem>>, vector<1x2x16xbf16>
    %77 = vector.shape_cast %76 : vector<1x2x16xbf16> to vector<2x16xbf16>
    %cst_41 = arith.constant dense<0.000000e+00> : vector<2x128xf32>
    %78 = tpu.matmul %77, %0, %cst_41 {dimension_numbers = #tpu.dot_dimension_numbers<[1], [0], [0], [1], [0, 0, 1, 1], [], []>} : vector<2x16xbf16>, vector<16x128xbf16>, vector<2x128xf32> -> vector<2x128xf32>
    %79 = arith.addf %78, %4 : vector<2x128xf32>
    %80 = arith.truncf %79 : vector<2x128xf32> to vector<2x128xbf16>
    %81 = arith.index_cast %c7_i32 : i32 to index
    %c0_42 = arith.constant 0 : index
    %c0_43 = arith.constant 0 : index
    %82 = vector.load %arg7[%81, %c0_42, %c0_43] : memref<8x2x128xbf16, #tpu.memory_space<vmem>>, vector<1x2x128xbf16>
    %83 = vector.shape_cast %82 : vector<1x2x128xbf16> to vector<2x128xbf16>
    %84 = vector.shape_cast %80 : vector<2x128xbf16> to vector<1x2x128xbf16>
    tpu.vector_store %arg7[%81, %c0_42, %c0_43], %84 {strides = array<i32>} : memref<8x2x128xbf16, #tpu.memory_space<vmem>>, vector<1x2x128xbf16>,
    %c8_i32 = arith.constant 8 : i32
    %c0_44 = arith.constant 0 : index
    %c0_45 = arith.constant 0 : index
    %c0_46 = arith.constant 0 : index
    %85 = vector.load %arg7[%c0_44, %c0_45, %c0_46] : memref<8x2x128xbf16, #tpu.memory_space<vmem>>, vector<1x2x128xbf16>
    %86 = vector.shape_cast %85 : vector<1x2x128xbf16> to vector<2x128xbf16>
    %87 = arith.extf %86 : vector<2x128xbf16> to vector<2x128xf32>
    %88 = vector.extract_strided_slice %87 {offsets = [0, 0], sizes = [2, 96], strides = [1, 1]} : vector<2x128xf32> to vector<2x96xf32>
    %89 = arith.negf %88 : vector<2x96xf32>
    %90 = math.exp %89 : vector<2x96xf32>
    %cst_47 = arith.constant 1.000000e+00 : f32
    %91 = vector.broadcast %cst_47 : f32 to vector<2x96xf32>
    %92 = arith.addf %91, %90 : vector<2x96xf32>
    %93 = arith.divf %91, %92 : vector<2x96xf32>
    %94 = vector.extract_strided_slice %93 {offsets = [0, 0], sizes = [2, 32], strides = [1, 1]} : vector<2x96xf32> to vector<2x32xf32>
    %95 = vector.extract_strided_slice %93 {offsets = [0, 64], sizes = [2, 32], strides = [1, 1]} : vector<2x96xf32> to vector<2x32xf32>
    %96 = vector.extract_strided_slice %87 {offsets = [0, 96], sizes = [2, 32], strides = [1, 1]} : vector<2x128xf32> to vector<2x32xf32>
    %97 = math.tanh %96 : vector<2x32xf32>
    %98 = arith.mulf %94, %97 : vector<2x32xf32>
    %99 = math.tanh %98 : vector<2x32xf32>
    %100 = arith.mulf %95, %99 : vector<2x32xf32>
    %101 = arith.truncf %100 : vector<2x32xf32> to vector<2x32xbf16>
    %c1_i32_48 = arith.constant 1 : i32
    %cst_49 = arith.constant dense<0.000000e+00> : vector<2x128xf32>
    %102 = tpu.matmul %101, %1, %cst_49 {dimension_numbers = #tpu.dot_dimension_numbers<[1], [0], [0], [1], [0, 0, 1, 1], [], []>} : vector<2x32xbf16>, vector<32x128xbf16>, vector<2x128xf32> -> vector<2x128xf32>
    %103 = arith.index_cast %c1_i32_48 : i32 to index
    %c0_50 = arith.constant 0 : index
    %c0_51 = arith.constant 0 : index
    %104 = vector.load %arg7[%103, %c0_50, %c0_51] : memref<8x2x128xbf16, #tpu.memory_space<vmem>>, vector<1x2x128xbf16>
    %105 = vector.shape_cast %104 : vector<1x2x128xbf16> to vector<2x128xbf16>
    %106 = arith.extf %105 : vector<2x128xbf16> to vector<2x128xf32>
    %107 = arith.addf %102, %106 : vector<2x128xf32>
    %108 = vector.extract_strided_slice %107 {offsets = [0, 0], sizes = [2, 96], strides = [1, 1]} : vector<2x128xf32> to vector<2x96xf32>
    %109 = arith.negf %108 : vector<2x96xf32>
    %110 = math.exp %109 : vector<2x96xf32>
    %cst_52 = arith.constant 1.000000e+00 : f32
    %111 = vector.broadcast %cst_52 : f32 to vector<2x96xf32>
    %112 = arith.addf %111, %110 : vector<2x96xf32>
    %113 = arith.divf %111, %112 : vector<2x96xf32>
    %114 = vector.extract_strided_slice %113 {offsets = [0, 0], sizes = [2, 32], strides = [1, 1]} : vector<2x96xf32> to vector<2x32xf32>
    %115 = vector.extract_strided_slice %113 {offsets = [0, 32], sizes = [2, 32], strides = [1, 1]} : vector<2x96xf32> to vector<2x32xf32>
    %116 = vector.extract_strided_slice %113 {offsets = [0, 64], sizes = [2, 32], strides = [1, 1]} : vector<2x96xf32> to vector<2x32xf32>
    %117 = vector.extract_strided_slice %107 {offsets = [0, 96], sizes = [2, 32], strides = [1, 1]} : vector<2x128xf32> to vector<2x32xf32>
    %118 = math.tanh %117 : vector<2x32xf32>
    %119 = arith.mulf %115, %98 : vector<2x32xf32>
    %120 = arith.mulf %114, %118 : vector<2x32xf32>
    %121 = arith.addf %119, %120 : vector<2x32xf32>
    %122 = math.tanh %121 : vector<2x32xf32>
    %123 = arith.mulf %116, %122 : vector<2x32xf32>
    %124 = arith.truncf %123 : vector<2x32xf32> to vector<2x32xbf16>
    %c2_i32_53 = arith.constant 2 : i32
    %cst_54 = arith.constant dense<0.000000e+00> : vector<2x128xf32>
    %125 = tpu.matmul %124, %1, %cst_54 {dimension_numbers = #tpu.dot_dimension_numbers<[1], [0], [0], [1], [0, 0, 1, 1], [], []>} : vector<2x32xbf16>, vector<32x128xbf16>, vector<2x128xf32> -> vector<2x128xf32>
    %126 = arith.index_cast %c2_i32_53 : i32 to index
    %c0_55 = arith.constant 0 : index
    %c0_56 = arith.constant 0 : index
    %127 = vector.load %arg7[%126, %c0_55, %c0_56] : memref<8x2x128xbf16, #tpu.memory_space<vmem>>, vector<1x2x128xbf16>
    %128 = vector.shape_cast %127 : vector<1x2x128xbf16> to vector<2x128xbf16>
    %129 = arith.extf %128 : vector<2x128xbf16> to vector<2x128xf32>
    %130 = arith.addf %125, %129 : vector<2x128xf32>
    %131 = vector.extract_strided_slice %130 {offsets = [0, 0], sizes = [2, 96], strides = [1, 1]} : vector<2x128xf32> to vector<2x96xf32>
    %132 = arith.negf %131 : vector<2x96xf32>
    %133 = math.exp %132 : vector<2x96xf32>
    %cst_57 = arith.constant 1.000000e+00 : f32
    %134 = vector.broadcast %cst_57 : f32 to vector<2x96xf32>
    %135 = arith.addf %134, %133 : vector<2x96xf32>
    %136 = arith.divf %134, %135 : vector<2x96xf32>
    %137 = vector.extract_strided_slice %136 {offsets = [0, 0], sizes = [2, 32], strides = [1, 1]} : vector<2x96xf32> to vector<2x32xf32>
    %138 = vector.extract_strided_slice %136 {offsets = [0, 32], sizes = [2, 32], strides = [1, 1]} : vector<2x96xf32> to vector<2x32xf32>
    %139 = vector.extract_strided_slice %136 {offsets = [0, 64], sizes = [2, 32], strides = [1, 1]} : vector<2x96xf32> to vector<2x32xf32>
    %140 = vector.extract_strided_slice %130 {offsets = [0, 96], sizes = [2, 32], strides = [1, 1]} : vector<2x128xf32> to vector<2x32xf32>
    %141 = math.tanh %140 : vector<2x32xf32>
    %142 = arith.mulf %138, %121 : vector<2x32xf32>
    %143 = arith.mulf %137, %141 : vector<2x32xf32>
    %144 = arith.addf %142, %143 : vector<2x32xf32>
    %145 = math.tanh %144 : vector<2x32xf32>
    %146 = arith.mulf %139, %145 : vector<2x32xf32>
    %147 = arith.truncf %146 : vector<2x32xf32> to vector<2x32xbf16>
    %c3_i32_58 = arith.constant 3 : i32
    %cst_59 = arith.constant dense<0.000000e+00> : vector<2x128xf32>
    %148 = tpu.matmul %147, %1, %cst_59 {dimension_numbers = #tpu.dot_dimension_numbers<[1], [0], [0], [1], [0, 0, 1, 1], [], []>} : vector<2x32xbf16>, vector<32x128xbf16>, vector<2x128xf32> -> vector<2x128xf32>
    %149 = arith.index_cast %c3_i32_58 : i32 to index
    %c0_60 = arith.constant 0 : index
    %c0_61 = arith.constant 0 : index
    %150 = vector.load %arg7[%149, %c0_60, %c0_61] : memref<8x2x128xbf16, #tpu.memory_space<vmem>>, vector<1x2x128xbf16>
    %151 = vector.shape_cast %150 : vector<1x2x128xbf16> to vector<2x128xbf16>
    %152 = arith.extf %151 : vector<2x128xbf16> to vector<2x128xf32>
    %153 = arith.addf %148, %152 : vector<2x128xf32>
    %154 = vector.extract_strided_slice %153 {offsets = [0, 0], sizes = [2, 96], strides = [1, 1]} : vector<2x128xf32> to vector<2x96xf32>
    %155 = arith.negf %154 : vector<2x96xf32>
    %156 = math.exp %155 : vector<2x96xf32>
    %cst_62 = arith.constant 1.000000e+00 : f32
    %157 = vector.broadcast %cst_62 : f32 to vector<2x96xf32>
    %158 = arith.addf %157, %156 : vector<2x96xf32>
    %159 = arith.divf %157, %158 : vector<2x96xf32>
    %160 = vector.extract_strided_slice %159 {offsets = [0, 0], sizes = [2, 32], strides = [1, 1]} : vector<2x96xf32> to vector<2x32xf32>
    %161 = vector.extract_strided_slice %159 {offsets = [0, 32], sizes = [2, 32], strides = [1, 1]} : vector<2x96xf32> to vector<2x32xf32>
    %162 = vector.extract_strided_slice %159 {offsets = [0, 64], sizes = [2, 32], strides = [1, 1]} : vector<2x96xf32> to vector<2x32xf32>
    %163 = vector.extract_strided_slice %153 {offsets = [0, 96], sizes = [2, 32], strides = [1, 1]} : vector<2x128xf32> to vector<2x32xf32>
    %164 = math.tanh %163 : vector<2x32xf32>
    %165 = arith.mulf %161, %144 : vector<2x32xf32>
    %166 = arith.mulf %160, %164 : vector<2x32xf32>
    %167 = arith.addf %165, %166 : vector<2x32xf32>
    %168 = math.tanh %167 : vector<2x32xf32>
    %169 = arith.mulf %162, %168 : vector<2x32xf32>
    %170 = arith.truncf %169 : vector<2x32xf32> to vector<2x32xbf16>
    %c4_i32_63 = arith.constant 4 : i32
    %cst_64 = arith.constant dense<0.000000e+00> : vector<2x128xf32>
    %171 = tpu.matmul %170, %1, %cst_64 {dimension_numbers = #tpu.dot_dimension_numbers<[1], [0], [0], [1], [0, 0, 1, 1], [], []>} : vector<2x32xbf16>, vector<32x128xbf16>, vector<2x128xf32> -> vector<2x128xf32>
    %172 = arith.index_cast %c4_i32_63 : i32 to index
    %c0_65 = arith.constant 0 : index
    %c0_66 = arith.constant 0 : index
    %173 = vector.load %arg7[%172, %c0_65, %c0_66] : memref<8x2x128xbf16, #tpu.memory_space<vmem>>, vector<1x2x128xbf16>
    %174 = vector.shape_cast %173 : vector<1x2x128xbf16> to vector<2x128xbf16>
    %175 = arith.extf %174 : vector<2x128xbf16> to vector<2x128xf32>
    %176 = arith.addf %171, %175 : vector<2x128xf32>
    %177 = vector.extract_strided_slice %176 {offsets = [0, 0], sizes = [2, 96], strides = [1, 1]} : vector<2x128xf32> to vector<2x96xf32>
    %178 = arith.negf %177 : vector<2x96xf32>
    %179 = math.exp %178 : vector<2x96xf32>
    %cst_67 = arith.constant 1.000000e+00 : f32
    %180 = vector.broadcast %cst_67 : f32 to vector<2x96xf32>
    %181 = arith.addf %180, %179 : vector<2x96xf32>
    %182 = arith.divf %180, %181 : vector<2x96xf32>
    %183 = vector.extract_strided_slice %182 {offsets = [0, 0], sizes = [2, 32], strides = [1, 1]} : vector<2x96xf32> to vector<2x32xf32>
    %184 = vector.extract_strided_slice %182 {offsets = [0, 32], sizes = [2, 32], strides = [1, 1]} : vector<2x96xf32> to vector<2x32xf32>
    %185 = vector.extract_strided_slice %182 {offsets = [0, 64], sizes = [2, 32], strides = [1, 1]} : vector<2x96xf32> to vector<2x32xf32>
    %186 = vector.extract_strided_slice %176 {offsets = [0, 96], sizes = [2, 32], strides = [1, 1]} : vector<2x128xf32> to vector<2x32xf32>
    %187 = math.tanh %186 : vector<2x32xf32>
    %188 = arith.mulf %184, %167 : vector<2x32xf32>
    %189 = arith.mulf %183, %187 : vector<2x32xf32>
    %190 = arith.addf %188, %189 : vector<2x32xf32>
    %191 = math.tanh %190 : vector<2x32xf32>
    %192 = arith.mulf %185, %191 : vector<2x32xf32>
    %193 = arith.truncf %192 : vector<2x32xf32> to vector<2x32xbf16>
    %c5_i32_68 = arith.constant 5 : i32
    %cst_69 = arith.constant dense<0.000000e+00> : vector<2x128xf32>
    %194 = tpu.matmul %193, %1, %cst_69 {dimension_numbers = #tpu.dot_dimension_numbers<[1], [0], [0], [1], [0, 0, 1, 1], [], []>} : vector<2x32xbf16>, vector<32x128xbf16>, vector<2x128xf32> -> vector<2x128xf32>
    %195 = arith.index_cast %c5_i32_68 : i32 to index
    %c0_70 = arith.constant 0 : index
    %c0_71 = arith.constant 0 : index
    %196 = vector.load %arg7[%195, %c0_70, %c0_71] : memref<8x2x128xbf16, #tpu.memory_space<vmem>>, vector<1x2x128xbf16>
    %197 = vector.shape_cast %196 : vector<1x2x128xbf16> to vector<2x128xbf16>
    %198 = arith.extf %197 : vector<2x128xbf16> to vector<2x128xf32>
    %199 = arith.addf %194, %198 : vector<2x128xf32>
    %200 = vector.extract_strided_slice %199 {offsets = [0, 0], sizes = [2, 96], strides = [1, 1]} : vector<2x128xf32> to vector<2x96xf32>
    %201 = arith.negf %200 : vector<2x96xf32>
    %202 = math.exp %201 : vector<2x96xf32>
    %cst_72 = arith.constant 1.000000e+00 : f32
    %203 = vector.broadcast %cst_72 : f32 to vector<2x96xf32>
    %204 = arith.addf %203, %202 : vector<2x96xf32>
    %205 = arith.divf %203, %204 : vector<2x96xf32>
    %206 = vector.extract_strided_slice %205 {offsets = [0, 0], sizes = [2, 32], strides = [1, 1]} : vector<2x96xf32> to vector<2x32xf32>
    %207 = vector.extract_strided_slice %205 {offsets = [0, 32], sizes = [2, 32], strides = [1, 1]} : vector<2x96xf32> to vector<2x32xf32>
    %208 = vector.extract_strided_slice %205 {offsets = [0, 64], sizes = [2, 32], strides = [1, 1]} : vector<2x96xf32> to vector<2x32xf32>
    %209 = vector.extract_strided_slice %199 {offsets = [0, 96], sizes = [2, 32], strides = [1, 1]} : vector<2x128xf32> to vector<2x32xf32>
    %210 = math.tanh %209 : vector<2x32xf32>
    %211 = arith.mulf %207, %190 : vector<2x32xf32>
    %212 = arith.mulf %206, %210 : vector<2x32xf32>
    %213 = arith.addf %211, %212 : vector<2x32xf32>
    %214 = math.tanh %213 : vector<2x32xf32>
    %215 = arith.mulf %208, %214 : vector<2x32xf32>
    %216 = arith.truncf %215 : vector<2x32xf32> to vector<2x32xbf16>
    %c6_i32_73 = arith.constant 6 : i32
    %cst_74 = arith.constant dense<0.000000e+00> : vector<2x128xf32>
    %217 = tpu.matmul %216, %1, %cst_74 {dimension_numbers = #tpu.dot_dimension_numbers<[1], [0], [0], [1], [0, 0, 1, 1], [], []>} : vector<2x32xbf16>, vector<32x128xbf16>, vector<2x128xf32> -> vector<2x128xf32>
    %218 = arith.index_cast %c6_i32_73 : i32 to index
    %c0_75 = arith.constant 0 : index
    %c0_76 = arith.constant 0 : index
    %219 = vector.load %arg7[%218, %c0_75, %c0_76] : memref<8x2x128xbf16, #tpu.memory_space<vmem>>, vector<1x2x128xbf16>
    %220 = vector.shape_cast %219 : vector<1x2x128xbf16> to vector<2x128xbf16>
    %221 = arith.extf %220 : vector<2x128xbf16> to vector<2x128xf32>
    %222 = arith.addf %217, %221 : vector<2x128xf32>
    %223 = vector.extract_strided_slice %222 {offsets = [0, 0], sizes = [2, 96], strides = [1, 1]} : vector<2x128xf32> to vector<2x96xf32>
    %224 = arith.negf %223 : vector<2x96xf32>
    %225 = math.exp %224 : vector<2x96xf32>
    %cst_77 = arith.constant 1.000000e+00 : f32
    %226 = vector.broadcast %cst_77 : f32 to vector<2x96xf32>
    %227 = arith.addf %226, %225 : vector<2x96xf32>
    %228 = arith.divf %226, %227 : vector<2x96xf32>
    %229 = vector.extract_strided_slice %228 {offsets = [0, 0], sizes = [2, 32], strides = [1, 1]} : vector<2x96xf32> to vector<2x32xf32>
    %230 = vector.extract_strided_slice %228 {offsets = [0, 32], sizes = [2, 32], strides = [1, 1]} : vector<2x96xf32> to vector<2x32xf32>
    %231 = vector.extract_strided_slice %228 {offsets = [0, 64], sizes = [2, 32], strides = [1, 1]} : vector<2x96xf32> to vector<2x32xf32>
    %232 = vector.extract_strided_slice %222 {offsets = [0, 96], sizes = [2, 32], strides = [1, 1]} : vector<2x128xf32> to vector<2x32xf32>
    %233 = math.tanh %232 : vector<2x32xf32>
    %234 = arith.mulf %230, %213 : vector<2x32xf32>
    %235 = arith.mulf %229, %233 : vector<2x32xf32>
    %236 = arith.addf %234, %235 : vector<2x32xf32>
    %237 = math.tanh %236 : vector<2x32xf32>
    %238 = arith.mulf %231, %237 : vector<2x32xf32>
    %239 = arith.truncf %238 : vector<2x32xf32> to vector<2x32xbf16>
    %c7_i32_78 = arith.constant 7 : i32
    %cst_79 = arith.constant dense<0.000000e+00> : vector<2x128xf32>
    %240 = tpu.matmul %239, %1, %cst_79 {dimension_numbers = #tpu.dot_dimension_numbers<[1], [0], [0], [1], [0, 0, 1, 1], [], []>} : vector<2x32xbf16>, vector<32x128xbf16>, vector<2x128xf32> -> vector<2x128xf32>
    %241 = arith.index_cast %c7_i32_78 : i32 to index
    %c0_80 = arith.constant 0 : index
    %c0_81 = arith.constant 0 : index
    %242 = vector.load %arg7[%241, %c0_80, %c0_81] : memref<8x2x128xbf16, #tpu.memory_space<vmem>>, vector<1x2x128xbf16>
    %243 = vector.shape_cast %242 : vector<1x2x128xbf16> to vector<2x128xbf16>
    %244 = arith.extf %243 : vector<2x128xbf16> to vector<2x128xf32>
    %245 = arith.addf %240, %244 : vector<2x128xf32>
    %246 = vector.extract_strided_slice %245 {offsets = [0, 0], sizes = [2, 96], strides = [1, 1]} : vector<2x128xf32> to vector<2x96xf32>
    %247 = arith.negf %246 : vector<2x96xf32>
    %248 = math.exp %247 : vector<2x96xf32>
    %cst_82 = arith.constant 1.000000e+00 : f32
    %249 = vector.broadcast %cst_82 : f32 to vector<2x96xf32>
    %250 = arith.addf %249, %248 : vector<2x96xf32>
    %251 = arith.divf %249, %250 : vector<2x96xf32>
    %252 = vector.extract_strided_slice %251 {offsets = [0, 0], sizes = [2, 32], strides = [1, 1]} : vector<2x96xf32> to vector<2x32xf32>
    %253 = vector.extract_strided_slice %251 {offsets = [0, 32], sizes = [2, 32], strides = [1, 1]} : vector<2x96xf32> to vector<2x32xf32>
    %254 = vector.extract_strided_slice %251 {offsets = [0, 64], sizes = [2, 32], strides = [1, 1]} : vector<2x96xf32> to vector<2x32xf32>
    %255 = vector.extract_strided_slice %245 {offsets = [0, 96], sizes = [2, 32], strides = [1, 1]} : vector<2x128xf32> to vector<2x32xf32>
    %256 = math.tanh %255 : vector<2x32xf32>
    %257 = arith.mulf %253, %236 : vector<2x32xf32>
    %258 = arith.mulf %252, %256 : vector<2x32xf32>
    %259 = arith.addf %257, %258 : vector<2x32xf32>
    %260 = math.tanh %259 : vector<2x32xf32>
    %261 = arith.mulf %254, %260 : vector<2x32xf32>
    %262 = arith.truncf %261 : vector<2x32xf32> to vector<2x32xbf16>
    %c7_i32_83 = arith.constant 7 : i32
    %c0_84 = arith.constant 0 : index
    %c0_85 = arith.constant 0 : index
    %263 = vector.load %arg4[%c0_84, %c0_85] : memref<32x4xbf16, #tpu.memory_space<vmem>>, vector<32x4xbf16>
    %cst_86 = arith.constant dense<0.000000e+00> : vector<2x4xf32>
    %264 = tpu.matmul %262, %263, %cst_86 {dimension_numbers = #tpu.dot_dimension_numbers<[1], [0], [0], [1], [0, 0, 1, 1], [], []>} : vector<2x32xbf16>, vector<32x4xbf16>, vector<2x4xf32> -> vector<2x4xf32>
    %c0_87 = arith.constant 0 : index
    %c0_88 = arith.constant 0 : index
    %265 = vector.load %arg5[%c0_87, %c0_88] : memref<1x4xf32, #tpu.memory_space<vmem>>, vector<1x4xf32>
    %266 = vector.broadcast %265 : vector<1x4xf32> to vector<2x4xf32>
    %267 = arith.addf %264, %266 : vector<2x4xf32>
    %cst_89 = arith.constant dense<0xFF800000> : vector<2xf32>
    %268 = vector.multi_reduction <maximumf>, %267, %cst_89 [1] : vector<2x4xf32> to vector<2xf32>
    %269 = vector.shape_cast %268 : vector<2xf32> to vector<2x1xf32>
    %270 = vector.broadcast %269 : vector<2x1xf32> to vector<2x4xf32>
    %271 = arith.subf %267, %270 : vector<2x4xf32>
    %272 = math.exp %271 : vector<2x4xf32>
    %cst_90 = arith.constant dense<0.000000e+00> : vector<2xf32>
    %273 = vector.multi_reduction <add>, %272, %cst_90 [1] : vector<2x4xf32> to vector<2xf32>
    %274 = vector.shape_cast %273 : vector<2xf32> to vector<2x1xf32>
    %275 = tpu.reciprocal %274 : vector<2x1xf32> -> vector<2x1xf32>
    %276 = vector.broadcast %275 : vector<2x1xf32> to vector<2x4xf32>
    %277 = arith.mulf %272, %276 : vector<2x4xf32>
    %c0_91 = arith.constant 0 : index
    %c0_92 = arith.constant 0 : index
    %278 = vector.load %arg6[%c0_91, %c0_92] : memref<2x4xf32, #tpu.memory_space<vmem>>, vector<2x4xf32>
    tpu.vector_store %arg6[%c0_91, %c0_92], %277 {strides = array<i32>} : memref<2x4xf32, #tpu.memory_space<vmem>>, vector<2x4xf32>,
    return
  }
}

</mosaic_0001>

<llo_original>
// kernel: tpu_custom_call.1
$region0: #{tpu_custom_call.1}
  #allocation0 [shape = 'u32[]', space=smem, size = 0x4, offset = 0x4, fixed_abs, tag = 'smem constant byte address 0x4 - core index']
  #allocation1 [shape = 'u32[144,128]{1,0:T(1,128)}', space=vmem, size = 0x12000, scoped, tag = 'internal scratch']
  #allocation2 [shape = 'bf16[8,2,128]{2,1,0:T(2,128)(2,1)}', space=vmem, size = 0x1000, scoped, tag = 'scratch operand']
  %s0 = inlined_call_operand.vmem [shape: bf16[8,2,16], index: 0, kind: input, shape index: {}]
  %s1 = inlined_call_operand.hbm [shape: bf16[16,128], index: 1, kind: input, shape index: {}]
  %s2 = inlined_call_operand.vmem [shape: bf16[32,128], index: 2, kind: input, shape index: {}]
  %s3 = inlined_call_operand.vmem [shape: f32[1,128], index: 3, kind: input, shape index: {}]
  %s4 = inlined_call_operand.vmem [shape: bf16[32,4], index: 4, kind: input, shape index: {}]
  %s5 = inlined_call_operand.vmem [shape: f32[1,4], index: 5, kind: input, shape index: {}]
  %s6 = inlined_call_operand.hbm [shape: f32[2,4], index: 6, kind: output, shape index: {}]
  %s7 = sld [smem:[#allocation0]]
  $region38: #{tpu_custom_call.1} parent=0
    _
  %s9 = ssub.s32 1, %s7
  %s10 = scalar_select 0, %s9, %s7
  $region1: #{tpu_custom_call.1} parent=0
    #allocation3 [shape = 'u8[4096]{0}', space=vmem, size = 0x1000, scoped, tag = 'input window, operand 1, single buffered']
    #allocation4 [shape = 's32[1]{0}', space=sflag, size = 0x4, scoped, tag = 'scoped memory for tpu_custom_call.1']
    #allocation5 [shape = 's32[1]{0}', space=sflag, size = 0x4, scoped, tag = 'scoped memory for tpu_custom_call.1']
    #allocation6 [shape = 'u8[1024]{0}', space=vmem, size = 0x400, scoped, tag = 'output window, operand 0, single buffered']
    %11 = vsyncpa [#allocation4], 0
    %12 = vsyncpa [#allocation5], 0
    // Predicated region
    $region2: #{tpu_custom_call.1} parent=1 // pred_check
      _
    $region3: #{tpu_custom_call.1} parent=1 // pred_check_branch
      %14 = sbr.rel (0) target = $region5
    $region4: #{tpu_custom_call.1} parent=1 // pred_region
      _
    $region5: #{tpu_custom_call.1} parent=1 // pred_fallthru
      _
    // Predicated region
    $region6: #{tpu_custom_call.1} parent=1 // pred_check
      _
    $region7: #{tpu_custom_call.1} parent=1 // pred_check_branch
      %16 = sbr.rel (0) target = $region9
    $region8: #{tpu_custom_call.1} parent=1 // pred_region
      %s18 = ssub.s32 128, 128
      %19 = vsyncadd [#allocation4], %s18
      %s20 = sshll.u32 [#allocation3], 4
      %s21 = int_to_ptr.vmem [resolvable:$true] %s20
      %26 = dma.hbm_to_vmem [thread:$0]  %s1, 128, %s21, [#allocation4], 64, 64, 4
    $region9: #{tpu_custom_call.1} parent=1 // pred_fallthru
      _
    // Predicated region
    $region10: #{tpu_custom_call.1} parent=1 // pred_check
      _
    $region11: #{tpu_custom_call.1} parent=1 // pred_check_branch
      %28 = sbr.rel (0) target = $region13
    $region12: #{tpu_custom_call.1} parent=1 // pred_region
      _
    $region13: #{tpu_custom_call.1} parent=1 // pred_fallthru
      _
    // Predicated region
    $region14: #{tpu_custom_call.1} parent=1 // pred_check
      _
    $region15: #{tpu_custom_call.1} parent=1 // pred_check_branch
      %30 = sbr.rel (0) target = $region17
    $region16: #{tpu_custom_call.1} parent=1 // pred_region
      _
    $region17: #{tpu_custom_call.1} parent=1 // pred_fallthru
      _
    // Predicated region
    $region18: #{tpu_custom_call.1} parent=1 // pred_check
      _
    $region19: #{tpu_custom_call.1} parent=1 // pred_check_branch
      %32 = sbr.rel (0) target = $region21
    $region20: #{tpu_custom_call.1} parent=1 // pred_region
      _
    $region21: #{tpu_custom_call.1} parent=1 // pred_fallthru
      _
    // Predicated region
    $region22: #{tpu_custom_call.1} parent=1 // pred_check
      _
    $region23: #{tpu_custom_call.1} parent=1 // pred_check_branch
      %34 = sbr.rel (0) target = $region25
    $region24: #{tpu_custom_call.1} parent=1 // pred_region
      _
    $region25: #{tpu_custom_call.1} parent=1 // pred_fallthru
      _
    // Predicated region
    $region26: #{tpu_custom_call.1} parent=1 // pred_check
      _
    $region27: #{tpu_custom_call.1} parent=1 // pred_check_branch
      %36 = sbr.rel (0) target = $region29
    $region28: #{tpu_custom_call.1} parent=1 // pred_region
      %37 = dma.done [#allocation4], 128
    $region29: #{tpu_custom_call.1} parent=1 // pred_fallthru
      _
    %v39 = vld [vmem:[#allocation3] sm:$0xf]
    %v40 = vld [vmem:[#allocation3 + $0x4] sm:$0xf]
    %v41 = vld [vmem:[%s2] sm:$0xf]
    %v42 = vld [vmem:[%s2 + $0x4] sm:$0xf]
    %v43 = vld [vmem:[%s2 + $0x8] sm:$0xf]
    %v44 = vld [vmem:[%s2 + $0xc] sm:$0xf]
    %v45 = vld [vmem:[%s3] sm:$0x1]
    %v47 = vlaneseq
    %v48 = vshrl.u32 %v47, 7
    %v49 = vsub.s32 0, %v48
    %v50 = vrot.slane %v45, %v49
    %v52 = vld [vmem:[%s0] sm:$0x1]
    %v55 = vunpack.c.l.b16 %v39
    %v56 = vunpack.c.l.b16 %v40
    %v57 = vpack.c.b16 %v56, %v55
    %vm59 = vcmask 130048
    %v61 = vsel %vm59, %v52, 0
    %63 = vmatprep.subr.bf16.mxu0 0
    %64 = vmatpush1.bf16.msra.mxu0 %v57
    %65 = vmatprep.subr.bf16.mxu0 0
    %66 = vmatpush1.bf16.msra.mxu0 0
    %67 = vmatprep.subr.bf16.mxu0 0
    %68 = vmatpush1.bf16.msra.mxu0 0
    %69 = vmatprep.subr.bf16.mxu0 0
    %70 = vmatpush1.bf16.msra.mxu0 0
    %71 = vmatprep.subr.bf16.mxu0 0
    %72 = vmatpush1.bf16.msra.mxu0 0
    %73 = vmatprep.subr.bf16.mxu0 0
    %74 = vmatpush1.bf16.msra.mxu0 0
    %75 = vmatprep.subr.bf16.mxu0 0
    %76 = vmatpush1.bf16.msra.mxu0 0
    %77 = vmatprep.subr.bf16.mxu0 0
    %78 = vmatpush1.bf16.msra.mxu0 0
    %79 = vmatprep.subr.bf16.mxu0 0
    %80 = vmatpush1.bf16.msra.mxu0 0
    %81 = vmatprep.subr.bf16.mxu0 0
    %82 = vmatpush1.bf16.msra.mxu0 0
    %83 = vmatprep.subr.bf16.mxu0 0
    %84 = vmatpush1.bf16.msra.mxu0 0
    %85 = vmatprep.subr.bf16.mxu0 0
    %86 = vmatpush1.bf16.msra.mxu0 0
    %87 = vmatprep.subr.bf16.mxu0 0
    %88 = vmatpush1.bf16.msra.mxu0 0
    %89 = vmatprep.subr.bf16.mxu0 0
    %90 = vmatpush1.bf16.msra.mxu0 0
    %91 = vmatprep.subr.bf16.mxu0 0
    %92 = vmatpush1.bf16.msra.mxu0 0
    %93 = vmatprep.subr.bf16.mxu0 0
    %94 = vmatpush1.bf16.msra.mxu0 0
    %95 = vmatprep.mubr.bf16.mxu0 0
    %96 = vmatmul.mubr.bf16.gmra.mrb[0].mxu0 %v61
    %v97 = vpop.f32.mrb[0].mxu0
    %v98 = vadd.f32 %v50, %v97
    %v99 = vpop.f32.mrb[0].mxu0
    %v100 = vpop.f32.mrb[0].mxu0
    %v101 = vpop.f32.mrb[0].mxu0
    %102 = vdwg.mxu0
    %v103 = vpack.c.bf16 %v98, %v98
    %104 = vst [vmem:[#allocation2] sm:$0x1] %v103
    %s105 = scalar_lea.vmem %s0, 1
    %v106 = vld [vmem:[%s105] sm:$0x1]
    %v108 = vsel %vm59, %v106, 0
    %110 = vmatprep.subr.bf16.mxu0 0
    %111 = vmatpush1.bf16.msra.mxu0 %v57
    %112 = vmatprep.subr.bf16.mxu0 0
    %113 = vmatpush1.bf16.msra.mxu0 0
    %114 = vmatprep.subr.bf16.mxu0 0
    %115 = vmatpush1.bf16.msra.mxu0 0
    %116 = vmatprep.subr.bf16.mxu0 0
    %117 = vmatpush1.bf16.msra.mxu0 0
    %118 = vmatprep.subr.bf16.mxu0 0
    %119 = vmatpush1.bf16.msra.mxu0 0
    %120 = vmatprep.subr.bf16.mxu0 0
    %121 = vmatpush1.bf16.msra.mxu0 0
    %122 = vmatprep.subr.bf16.mxu0 0
    %123 = vmatpush1.bf16.msra.mxu0 0
    %124 = vmatprep.subr.bf16.mxu0 0
    %125 = vmatpush1.bf16.msra.mxu0 0
    %126 = vmatprep.subr.bf16.mxu0 0
    %127 = vmatpush1.bf16.msra.mxu0 0
    %128 = vmatprep.subr.bf16.mxu0 0
    %129 = vmatpush1.bf16.msra.mxu0 0
    %130 = vmatprep.subr.bf16.mxu0 0
    %131 = vmatpush1.bf16.msra.mxu0 0
    %132 = vmatprep.subr.bf16.mxu0 0
    %133 = vmatpush1.bf16.msra.mxu0 0
    %134 = vmatprep.subr.bf16.mxu0 0
    %135 = vmatpush1.bf16.msra.mxu0 0
    %136 = vmatprep.subr.bf16.mxu0 0
    %137 = vmatpush1.bf16.msra.mxu0 0
    %138 = vmatprep.subr.bf16.mxu0 0
    %139 = vmatpush1.bf16.msra.mxu0 0
    %140 = vmatprep.subr.bf16.mxu0 0
    %141 = vmatpush1.bf16.msra.mxu0 0
    %142 = vmatprep.mubr.bf16.mxu0 0
    %143 = vmatmul.mubr.bf16.gmra.mrb[0].mxu0 %v108
    %v144 = vpop.f32.mrb[0].mxu0
    %v145 = vadd.f32 %v50, %v144
    %v146 = vpop.f32.mrb[0].mxu0
    %v147 = vpop.f32.mrb[0].mxu0
    %v148 = vpop.f32.mrb[0].mxu0
    %149 = vdwg.mxu0
    %v150 = vpack.c.bf16 %v145, %v145
    %s151 = scalar_lea.vmem [#allocation2], 1
    %152 = vst [vmem:[%s151] sm:$0x1] %v150
    %s153 = scalar_lea.vmem %s0, 2
    %v154 = vld [vmem:[%s153] sm:$0x1]
    %v156 = vsel %vm59, %v154, 0
    %158 = vmatprep.subr.bf16.mxu0 0
    %159 = vmatpush1.bf16.msra.mxu0 %v57
    %160 = vmatprep.subr.bf16.mxu0 0
    %161 = vmatpush1.bf16.msra.mxu0 0
    %162 = vmatprep.subr.bf16.mxu0 0
    %163 = vmatpush1.bf16.msra.mxu0 0
    %164 = vmatprep.subr.bf16.mxu0 0
    %165 = vmatpush1.bf16.msra.mxu0 0
    %166 = vmatprep.subr.bf16.mxu0 0
    %167 = vmatpush1.bf16.msra.mxu0 0
    %168 = vmatprep.subr.bf16.mxu0 0
    %169 = vmatpush1.bf16.msra.mxu0 0
    %170 = vmatprep.subr.bf16.mxu0 0
    %171 = vmatpush1.bf16.msra.mxu0 0
    %172 = vmatprep.subr.bf16.mxu0 0
    %173 = vmatpush1.bf16.msra.mxu0 0
    %174 = vmatprep.subr.bf16.mxu0 0
    %175 = vmatpush1.bf16.msra.mxu0 0
    %176 = vmatprep.subr.bf16.mxu0 0
    %177 = vmatpush1.bf16.msra.mxu0 0
    %178 = vmatprep.subr.bf16.mxu0 0
    %179 = vmatpush1.bf16.msra.mxu0 0
    %180 = vmatprep.subr.bf16.mxu0 0
    %181 = vmatpush1.bf16.msra.mxu0 0
    %182 = vmatprep.subr.bf16.mxu0 0
    %183 = vmatpush1.bf16.msra.mxu0 0
    %184 = vmatprep.subr.bf16.mxu0 0
    %185 = vmatpush1.bf16.msra.mxu0 0
    %186 = vmatprep.subr.bf16.mxu0 0
    %187 = vmatpush1.bf16.msra.mxu0 0
    %188 = vmatprep.subr.bf16.mxu0 0
    %189 = vmatpush1.bf16.msra.mxu0 0
    %190 = vmatprep.mubr.bf16.mxu0 0
    %191 = vmatmul.mubr.bf16.gmra.mrb[0].mxu0 %v156
    %v192 = vpop.f32.mrb[0].mxu0
    %v193 = vadd.f32 %v50, %v192
    %v194 = vpop.f32.mrb[0].mxu0
    %v195 = vpop.f32.mrb[0].mxu0
    %v196 = vpop.f32.mrb[0].mxu0
    %197 = vdwg.mxu0
    %v198 = vpack.c.bf16 %v193, %v193
    %s199 = scalar_lea.vmem [#allocation2], 2
    %200 = vst [vmem:[%s199] sm:$0x1] %v198
    %s201 = scalar_lea.vmem %s0, 3
    %v202 = vld [vmem:[%s201] sm:$0x1]
    %v204 = vsel %vm59, %v202, 0
    %206 = vmatprep.subr.bf16.mxu0 0
    %207 = vmatpush1.bf16.msra.mxu0 %v57
    %208 = vmatprep.subr.bf16.mxu0 0
    %209 = vmatpush1.bf16.msra.mxu0 0
    %210 = vmatprep.subr.bf16.mxu0 0
    %211 = vmatpush1.bf16.msra.mxu0 0
    %212 = vmatprep.subr.bf16.mxu0 0
    %213 = vmatpush1.bf16.msra.mxu0 0
    %214 = vmatprep.subr.bf16.mxu0 0
    %215 = vmatpush1.bf16.msra.mxu0 0
    %216 = vmatprep.subr.bf16.mxu0 0
    %217 = vmatpush1.bf16.msra.mxu0 0
    %218 = vmatprep.subr.bf16.mxu0 0
    %219 = vmatpush1.bf16.msra.mxu0 0
    %220 = vmatprep.subr.bf16.mxu0 0
    %221 = vmatpush1.bf16.msra.mxu0 0
    %222 = vmatprep.subr.bf16.mxu0 0
    %223 = vmatpush1.bf16.msra.mxu0 0
    %224 = vmatprep.subr.bf16.mxu0 0
    %225 = vmatpush1.bf16.msra.mxu0 0
    %226 = vmatprep.subr.bf16.mxu0 0
    %227 = vmatpush1.bf16.msra.mxu0 0
    %228 = vmatprep.subr.bf16.mxu0 0
    %229 = vmatpush1.bf16.msra.mxu0 0
    %230 = vmatprep.subr.bf16.mxu0 0
    %231 = vmatpush1.bf16.msra.mxu0 0
    %232 = vmatprep.subr.bf16.mxu0 0
    %233 = vmatpush1.bf16.msra.mxu0 0
    %234 = vmatprep.subr.bf16.mxu0 0
    %235 = vmatpush1.bf16.msra.mxu0 0
    %236 = vmatprep.subr.bf16.mxu0 0
    %237 = vmatpush1.bf16.msra.mxu0 0
    %238 = vmatprep.mubr.bf16.mxu0 0
    %239 = vmatmul.mubr.bf16.gmra.mrb[0].mxu0 %v204
    %v240 = vpop.f32.mrb[0].mxu0
    %v241 = vadd.f32 %v50, %v240
    %v242 = vpop.f32.mrb[0].mxu0
    %v243 = vpop.f32.mrb[0].mxu0
    %v244 = vpop.f32.mrb[0].mxu0
    %245 = vdwg.mxu0
    %v246 = vpack.c.bf16 %v241, %v241
    %s247 = scalar_lea.vmem [#allocation2], 3
    %248 = vst [vmem:[%s247] sm:$0x1] %v246
    %s249 = scalar_lea.vmem %s0, 4
    %v250 = vld [vmem:[%s249] sm:$0x1]
    %v252 = vsel %vm59, %v250, 0
    %254 = vmatprep.subr.bf16.mxu0 0
    %255 = vmatpush1.bf16.msra.mxu0 %v57
    %256 = vmatprep.subr.bf16.mxu0 0
    %257 = vmatpush1.bf16.msra.mxu0 0
    %258 = vmatprep.subr.bf16.mxu0 0
    %259 = vmatpush1.bf16.msra.mxu0 0
    %260 = vmatprep.subr.bf16.mxu0 0
    %261 = vmatpush1.bf16.msra.mxu0 0
    %262 = vmatprep.subr.bf16.mxu0 0
    %263 = vmatpush1.bf16.msra.mxu0 0
    %264 = vmatprep.subr.bf16.mxu0 0
    %265 = vmatpush1.bf16.msra.mxu0 0
    %266 = vmatprep.subr.bf16.mxu0 0
    %267 = vmatpush1.bf16.msra.mxu0 0
    %268 = vmatprep.subr.bf16.mxu0 0
    %269 = vmatpush1.bf16.msra.mxu0 0
    %270 = vmatprep.subr.bf16.mxu0 0
    %271 = vmatpush1.bf16.msra.mxu0 0
    %272 = vmatprep.subr.bf16.mxu0 0
    %273 = vmatpush1.bf16.msra.mxu0 0
    %274 = vmatprep.subr.bf16.mxu0 0
    %275 = vmatpush1.bf16.msra.mxu0 0
    %276 = vmatprep.subr.bf16.mxu0 0
    %277 = vmatpush1.bf16.msra.mxu0 0
    %278 = vmatprep.subr.bf16.mxu0 0
    %279 = vmatpush1.bf16.msra.mxu0 0
    %280 = vmatprep.subr.bf16.mxu0 0
    %281 = vmatpush1.bf16.msra.mxu0 0
    %282 = vmatprep.subr.bf16.mxu0 0
    %283 = vmatpush1.bf16.msra.mxu0 0
    %284 = vmatprep.subr.bf16.mxu0 0
    %285 = vmatpush1.bf16.msra.mxu0 0
    %286 = vmatprep.mubr.bf16.mxu0 0
    %287 = vmatmul.mubr.bf16.gmra.mrb[0].mxu0 %v252
    %v288 = vpop.f32.mrb[0].mxu0
    %v289 = vadd.f32 %v50, %v288
    %v290 = vpop.f32.mrb[0].mxu0
    %v291 = vpop.f32.mrb[0].mxu0
    %v292 = vpop.f32.mrb[0].mxu0
    %293 = vdwg.mxu0
    %v294 = vpack.c.bf16 %v289, %v289
    %s295 = scalar_lea.vmem [#allocation2], 4
    %296 = vst [vmem:[%s295] sm:$0x1] %v294
    %s297 = scalar_lea.vmem %s0, 5
    %v298 = vld [vmem:[%s297] sm:$0x1]
    %v300 = vsel %vm59, %v298, 0
    %302 = vmatprep.subr.bf16.mxu0 0
    %303 = vmatpush1.bf16.msra.mxu0 %v57
    %304 = vmatprep.subr.bf16.mxu0 0
    %305 = vmatpush1.bf16.msra.mxu0 0
    %306 = vmatprep.subr.bf16.mxu0 0
    %307 = vmatpush1.bf16.msra.mxu0 0
    %308 = vmatprep.subr.bf16.mxu0 0
    %309 = vmatpush1.bf16.msra.mxu0 0
    %310 = vmatprep.subr.bf16.mxu0 0
    %311 = vmatpush1.bf16.msra.mxu0 0
    %312 = vmatprep.subr.bf16.mxu0 0
    %313 = vmatpush1.bf16.msra.mxu0 0
    %314 = vmatprep.subr.bf16.mxu0 0
    %315 = vmatpush1.bf16.msra.mxu0 0
    %316 = vmatprep.subr.bf16.mxu0 0
    %317 = vmatpush1.bf16.msra.mxu0 0
    %318 = vmatprep.subr.bf16.mxu0 0
    %319 = vmatpush1.bf16.msra.mxu0 0
    %320 = vmatprep.subr.bf16.mxu0 0
    %321 = vmatpush1.bf16.msra.mxu0 0
    %322 = vmatprep.subr.bf16.mxu0 0
    %323 = vmatpush1.bf16.msra.mxu0 0
    %324 = vmatprep.subr.bf16.mxu0 0
    %325 = vmatpush1.bf16.msra.mxu0 0
    %326 = vmatprep.subr.bf16.mxu0 0
    %327 = vmatpush1.bf16.msra.mxu0 0
    %328 = vmatprep.subr.bf16.mxu0 0
    %329 = vmatpush1.bf16.msra.mxu0 0
    %330 = vmatprep.subr.bf16.mxu0 0
    %331 = vmatpush1.bf16.msra.mxu0 0
    %332 = vmatprep.subr.bf16.mxu0 0
    %333 = vmatpush1.bf16.msra.mxu0 0
    %334 = vmatprep.mubr.bf16.mxu0 0
    %335 = vmatmul.mubr.bf16.gmra.mrb[0].mxu0 %v300
    %v336 = vpop.f32.mrb[0].mxu0
    %v337 = vadd.f32 %v50, %v336
    %v338 = vpop.f32.mrb[0].mxu0
    %v339 = vpop.f32.mrb[0].mxu0
    %v340 = vpop.f32.mrb[0].mxu0
    %341 = vdwg.mxu0
    %v342 = vpack.c.bf16 %v337, %v337
    %s343 = scalar_lea.vmem [#allocation2], 5
    %344 = vst [vmem:[%s343] sm:$0x1] %v342
    %s345 = scalar_lea.vmem %s0, 6
    %v346 = vld [vmem:[%s345] sm:$0x1]
    %v348 = vsel %vm59, %v346, 0
    %350 = vmatprep.subr.bf16.mxu0 0
    %351 = vmatpush1.bf16.msra.mxu0 %v57
    %352 = vmatprep.subr.bf16.mxu0 0
    %353 = vmatpush1.bf16.msra.mxu0 0
    %354 = vmatprep.subr.bf16.mxu0 0
    %355 = vmatpush1.bf16.msra.mxu0 0
    %356 = vmatprep.subr.bf16.mxu0 0
    %357 = vmatpush1.bf16.msra.mxu0 0
    %358 = vmatprep.subr.bf16.mxu0 0
    %359 = vmatpush1.bf16.msra.mxu0 0
    %360 = vmatprep.subr.bf16.mxu0 0
    %361 = vmatpush1.bf16.msra.mxu0 0
    %362 = vmatprep.subr.bf16.mxu0 0
    %363 = vmatpush1.bf16.msra.mxu0 0
    %364 = vmatprep.subr.bf16.mxu0 0
    %365 = vmatpush1.bf16.msra.mxu0 0
    %366 = vmatprep.subr.bf16.mxu0 0
    %367 = vmatpush1.bf16.msra.mxu0 0
    %368 = vmatprep.subr.bf16.mxu0 0
    %369 = vmatpush1.bf16.msra.mxu0 0
    %370 = vmatprep.subr.bf16.mxu0 0
    %371 = vmatpush1.bf16.msra.mxu0 0
    %372 = vmatprep.subr.bf16.mxu0 0
    %373 = vmatpush1.bf16.msra.mxu0 0
    %374 = vmatprep.subr.bf16.mxu0 0
    %375 = vmatpush1.bf16.msra.mxu0 0
    %376 = vmatprep.subr.bf16.mxu0 0
    %377 = vmatpush1.bf16.msra.mxu0 0
    %378 = vmatprep.subr.bf16.mxu0 0
    %379 = vmatpush1.bf16.msra.mxu0 0
    %380 = vmatprep.subr.bf16.mxu0 0
    %381 = vmatpush1.bf16.msra.mxu0 0
    %382 = vmatprep.mubr.bf16.mxu0 0
    %383 = vmatmul.mubr.bf16.gmra.mrb[0].mxu0 %v348
    %v384 = vpop.f32.mrb[0].mxu0
    %v385 = vadd.f32 %v50, %v384
    %v386 = vpop.f32.mrb[0].mxu0
    %v387 = vpop.f32.mrb[0].mxu0
    %v388 = vpop.f32.mrb[0].mxu0
    %389 = vdwg.mxu0
    %v390 = vpack.c.bf16 %v385, %v385
    %s391 = scalar_lea.vmem [#allocation2], 6
    %392 = vst [vmem:[%s391] sm:$0x1] %v390
    %s393 = scalar_lea.vmem %s0, 7
    %v394 = vld [vmem:[%s393] sm:$0x1]
    %v396 = vsel %vm59, %v394, 0
    %398 = vmatprep.subr.bf16.mxu0 0
    %399 = vmatpush1.bf16.msra.mxu0 %v57
    %400 = vmatprep.subr.bf16.mxu0 0
    %401 = vmatpush1.bf16.msra.mxu0 0
    %402 = vmatprep.subr.bf16.mxu0 0
    %403 = vmatpush1.bf16.msra.mxu0 0
    %404 = vmatprep.subr.bf16.mxu0 0
    %405 = vmatpush1.bf16.msra.mxu0 0
    %406 = vmatprep.subr.bf16.mxu0 0
    %407 = vmatpush1.bf16.msra.mxu0 0
    %408 = vmatprep.subr.bf16.mxu0 0
    %409 = vmatpush1.bf16.msra.mxu0 0
    %410 = vmatprep.subr.bf16.mxu0 0
    %411 = vmatpush1.bf16.msra.mxu0 0
    %412 = vmatprep.subr.bf16.mxu0 0
    %413 = vmatpush1.bf16.msra.mxu0 0
    %414 = vmatprep.subr.bf16.mxu0 0
    %415 = vmatpush1.bf16.msra.mxu0 0
    %416 = vmatprep.subr.bf16.mxu0 0
    %417 = vmatpush1.bf16.msra.mxu0 0
    %418 = vmatprep.subr.bf16.mxu0 0
    %419 = vmatpush1.bf16.msra.mxu0 0
    %420 = vmatprep.subr.bf16.mxu0 0
    %421 = vmatpush1.bf16.msra.mxu0 0
    %422 = vmatprep.subr.bf16.mxu0 0
    %423 = vmatpush1.bf16.msra.mxu0 0
    %424 = vmatprep.subr.bf16.mxu0 0
    %425 = vmatpush1.bf16.msra.mxu0 0
    %426 = vmatprep.subr.bf16.mxu0 0
    %427 = vmatpush1.bf16.msra.mxu0 0
    %428 = vmatprep.subr.bf16.mxu0 0
    %429 = vmatpush1.bf16.msra.mxu0 0
    %430 = vmatprep.mubr.bf16.mxu0 0
    %431 = vmatmul.mubr.bf16.gmra.mrb[0].mxu0 %v396
    %v432 = vpop.f32.mrb[0].mxu0
    %v433 = vadd.f32 %v50, %v432
    %v434 = vpop.f32.mrb[0].mxu0
    %v435 = vpop.f32.mrb[0].mxu0
    %v436 = vpop.f32.mrb[0].mxu0
    %437 = vdwg.mxu0
    %v438 = vpack.c.bf16 %v433, %v433
    %s439 = scalar_lea.vmem [#allocation2], 7
    %440 = vst [vmem:[%s439] sm:$0x1] %v438
    %v441 = vld [vmem:[#allocation2] sm:$0x1]
    %v442 = vunpack.c.l.bf16 %v441
    %v443 = vxor.u32 %v442, 2147483648
    %v444 = vmul.f32 %v443, 1.442695
    %v445 = vpow.pop %v444
    %v446 = vadd.f32 %v445, 1.0
    %v447 = vrcp.pop %v446
    %v448 = vmul.f32 1.0, %v447
    %v449 = vtanh.pop %v442
    %451 = vrot.lane.b32.xlu0 %v449, 32
    %v452 = vpop.permute.xlu0 %451
    %v454 = vmul.f32 %v448, %v452
    %v455 = vtanh.pop %v454
    %457 = vrot.lane.b32.xlu0 %v455, 64
    %v458 = vpop.permute.xlu0 %457
    %v460 = vmul.f32 %v448, %v458
    %v461 = vpack.c.bf16 %v460, %v460
    %v462 = vld [vmem:[%s151] sm:$0x1]
    %v463 = vunpack.c.l.bf16 %v462
    %465 = vrot.lane.b32.xlu0 %v461, 64
    %v466 = vpop.permute.xlu0 %465
    %v471 = vunpack.c.l.b16 %v41
    %v472 = vunpack.c.l.b16 %v42
    %v473 = vunpack.c.l.b16 %v43
    %v474 = vunpack.c.l.b16 %v44
    %v475 = vpack.c.b16 %v472, %v471
    %v476 = vpack.c.b16 %v474, %v473
    %vm479 = vcmask 261120
    %v481 = vsel %vm479, %v466, 0
    %483 = vmatprep.subr.bf16.mxu0 0
    %484 = vmatpush1.bf16.msra.mxu0 %v475
    %485 = vmatprep.subr.bf16.mxu0 0
    %486 = vmatpush1.bf16.msra.mxu0 %v476
    %487 = vmatprep.subr.bf16.mxu0 0
    %488 = vmatpush1.bf16.msra.mxu0 0
    %489 = vmatprep.subr.bf16.mxu0 0
    %490 = vmatpush1.bf16.msra.mxu0 0
    %491 = vmatprep.subr.bf16.mxu0 0
    %492 = vmatpush1.bf16.msra.mxu0 0
    %493 = vmatprep.subr.bf16.mxu0 0
    %494 = vmatpush1.bf16.msra.mxu0 0
    %495 = vmatprep.subr.bf16.mxu0 0
    %496 = vmatpush1.bf16.msra.mxu0 0
    %497 = vmatprep.subr.bf16.mxu0 0
    %498 = vmatpush1.bf16.msra.mxu0 0
    %499 = vmatprep.subr.bf16.mxu0 0
    %500 = vmatpush1.bf16.msra.mxu0 0
    %501 = vmatprep.subr.bf16.mxu0 0
    %502 = vmatpush1.bf16.msra.mxu0 0
    %503 = vmatprep.subr.bf16.mxu0 0
    %504 = vmatpush1.bf16.msra.mxu0 0
    %505 = vmatprep.subr.bf16.mxu0 0
    %506 = vmatpush1.bf16.msra.mxu0 0
    %507 = vmatprep.subr.bf16.mxu0 0
    %508 = vmatpush1.bf16.msra.mxu0 0
    %509 = vmatprep.subr.bf16.mxu0 0
    %510 = vmatpush1.bf16.msra.mxu0 0
    %511 = vmatprep.subr.bf16.mxu0 0
    %512 = vmatpush1.bf16.msra.mxu0 0
    %513 = vmatprep.subr.bf16.mxu0 0
    %514 = vmatpush1.bf16.msra.mxu0 0
    %515 = vmatprep.mubr.bf16.mxu0 0
    %516 = vmatmul.mubr.bf16.gmra.mrb[0].mxu0 %v481
    %v517 = vpop.f32.mrb[0].mxu0
    %v518 = vadd.f32 %v463, %v517
    %v519 = vpop.f32.mrb[0].mxu0
    %v520 = vpop.f32.mrb[0].mxu0
    %v521 = vpop.f32.mrb[0].mxu0
    %522 = vdwg.mxu0
    %v523 = vxor.u32 %v518, 2147483648
    %v524 = vmul.f32 %v523, 1.442695
    %v525 = vpow.pop %v524
    %v526 = vadd.f32 %v525, 1.0
    %v527 = vrcp.pop %v526
    %v528 = vmul.f32 1.0, %v527
    %v529 = vtanh.pop %v518
    %v532 = vunpack.c.l.s4 1983009808
    %v533 = vunpack.c.0.s8 %v532
    %v534 = vlaneseq
    %v535 = vshrl.u32 %v534, 7
    %v536 = vsub.s32 %v533, %v535
    %v537 = vrot.slane %v454, %v536
    %538 = vrot.lane.b32.xlu0 %v537, 32
    %v539 = vpop.permute.xlu0 %538
    %v541 = vmul.f32 %v528, %v539
    %543 = vrot.lane.b32.xlu0 %v529, 32
    %v544 = vpop.permute.xlu0 %543
    %v546 = vmul.f32 %v528, %v544
    %548 = vrot.lane.b32.xlu0 %v546, 32
    %v549 = vpop.permute.xlu0 %548
    %v551 = vadd.f32 %v541, %v549
    %v552 = vtanh.pop %v551
    %554 = vrot.lane.b32.xlu0 %v552, 32
    %v555 = vpop.permute.xlu0 %554
    %v557 = vmul.f32 %v528, %v555
    %v558 = vpack.c.bf16 %v557, %v557
    %v559 = vld [vmem:[%s199] sm:$0x1]
    %v560 = vunpack.c.l.bf16 %v559
    %562 = vrot.lane.b32.xlu0 %v558, 64
    %v563 = vpop.permute.xlu0 %562
    %v565 = vsel %vm479, %v563, 0
    %567 = vmatprep.subr.bf16.mxu0 0
    %568 = vmatpush1.bf16.msra.mxu0 %v475
    %569 = vmatprep.subr.bf16.mxu0 0
    %570 = vmatpush1.bf16.msra.mxu0 %v476
    %571 = vmatprep.subr.bf16.mxu0 0
    %572 = vmatpush1.bf16.msra.mxu0 0
    %573 = vmatprep.subr.bf16.mxu0 0
    %574 = vmatpush1.bf16.msra.mxu0 0
    %575 = vmatprep.subr.bf16.mxu0 0
    %576 = vmatpush1.bf16.msra.mxu0 0
    %577 = vmatprep.subr.bf16.mxu0 0
    %578 = vmatpush1.bf16.msra.mxu0 0
    %579 = vmatprep.subr.bf16.mxu0 0
    %580 = vmatpush1.bf16.msra.mxu0 0
    %581 = vmatprep.subr.bf16.mxu0 0
    %582 = vmatpush1.bf16.msra.mxu0 0
    %583 = vmatprep.subr.bf16.mxu0 0
    %584 = vmatpush1.bf16.msra.mxu0 0
    %585 = vmatprep.subr.bf16.mxu0 0
    %586 = vmatpush1.bf16.msra.mxu0 0
    %587 = vmatprep.subr.bf16.mxu0 0
    %588 = vmatpush1.bf16.msra.mxu0 0
    %589 = vmatprep.subr.bf16.mxu0 0
    %590 = vmatpush1.bf16.msra.mxu0 0
    %591 = vmatprep.subr.bf16.mxu0 0
    %592 = vmatpush1.bf16.msra.mxu0 0
    %593 = vmatprep.subr.bf16.mxu0 0
    %594 = vmatpush1.bf16.msra.mxu0 0
    %595 = vmatprep.subr.bf16.mxu0 0
    %596 = vmatpush1.bf16.msra.mxu0 0
    %597 = vmatprep.subr.bf16.mxu0 0
    %598 = vmatpush1.bf16.msra.mxu0 0
    %599 = vmatprep.mubr.bf16.mxu0 0
    %600 = vmatmul.mubr.bf16.gmra.mrb[0].mxu0 %v565
    %v601 = vpop.f32.mrb[0].mxu0
    %v602 = vadd.f32 %v560, %v601
    %v603 = vpop.f32.mrb[0].mxu0
    %v604 = vpop.f32.mrb[0].mxu0
    %v605 = vpop.f32.mrb[0].mxu0
    %606 = vdwg.mxu0
    %v607 = vxor.u32 %v602, 2147483648
    %v608 = vmul.f32 %v607, 1.442695
    %v609 = vpow.pop %v608
    %v610 = vadd.f32 %v609, 1.0
    %v611 = vrcp.pop %v610
    %v612 = vmul.f32 1.0, %v611
    %v613 = vtanh.pop %v602
    %v614 = vmul.f32 %v612, %v551
    %616 = vrot.lane.b32.xlu0 %v613, 32
    %v617 = vpop.permute.xlu0 %616
    %v619 = vmul.f32 %v612, %v617
    %621 = vrot.lane.b32.xlu0 %v619, 32
    %v622 = vpop.permute.xlu0 %621
    %v624 = vadd.f32 %v614, %v622
    %v625 = vtanh.pop %v624
    %627 = vrot.lane.b32.xlu0 %v625, 32
    %v628 = vpop.permute.xlu0 %627
    %v630 = vmul.f32 %v612, %v628
    %v631 = vpack.c.bf16 %v630, %v630
    %v632 = vld [vmem:[%s247] sm:$0x1]
    %v633 = vunpack.c.l.bf16 %v632
    %635 = vrot.lane.b32.xlu0 %v631, 64
    %v636 = vpop.permute.xlu0 %635
    %v638 = vsel %vm479, %v636, 0
    %640 = vmatprep.subr.bf16.mxu0 0
    %641 = vmatpush1.bf16.msra.mxu0 %v475
    %642 = vmatprep.subr.bf16.mxu0 0
    %643 = vmatpush1.bf16.msra.mxu0 %v476
    %644 = vmatprep.subr.bf16.mxu0 0
    %645 = vmatpush1.bf16.msra.mxu0 0
    %646 = vmatprep.subr.bf16.mxu0 0
    %647 = vmatpush1.bf16.msra.mxu0 0
    %648 = vmatprep.subr.bf16.mxu0 0
    %649 = vmatpush1.bf16.msra.mxu0 0
    %650 = vmatprep.subr.bf16.mxu0 0
    %651 = vmatpush1.bf16.msra.mxu0 0
    %652 = vmatprep.subr.bf16.mxu0 0
    %653 = vmatpush1.bf16.msra.mxu0 0
    %654 = vmatprep.subr.bf16.mxu0 0
    %655 = vmatpush1.bf16.msra.mxu0 0
    %656 = vmatprep.subr.bf16.mxu0 0
    %657 = vmatpush1.bf16.msra.mxu0 0
    %658 = vmatprep.subr.bf16.mxu0 0
    %659 = vmatpush1.bf16.msra.mxu0 0
    %660 = vmatprep.subr.bf16.mxu0 0
    %661 = vmatpush1.bf16.msra.mxu0 0
    %662 = vmatprep.subr.bf16.mxu0 0
    %663 = vmatpush1.bf16.msra.mxu0 0
    %664 = vmatprep.subr.bf16.mxu0 0
    %665 = vmatpush1.bf16.msra.mxu0 0
    %666 = vmatprep.subr.bf16.mxu0 0
    %667 = vmatpush1.bf16.msra.mxu0 0
    %668 = vmatprep.subr.bf16.mxu0 0
    %669 = vmatpush1.bf16.msra.mxu0 0
    %670 = vmatprep.subr.bf16.mxu0 0
    %671 = vmatpush1.bf16.msra.mxu0 0
    %672 = vmatprep.mubr.bf16.mxu0 0
    %673 = vmatmul.mubr.bf16.gmra.mrb[0].mxu0 %v638
    %v674 = vpop.f32.mrb[0].mxu0
    %v675 = vadd.f32 %v633, %v674
    %v676 = vpop.f32.mrb[0].mxu0
    %v677 = vpop.f32.mrb[0].mxu0
    %v678 = vpop.f32.mrb[0].mxu0
    %679 = vdwg.mxu0
    %v680 = vxor.u32 %v675, 2147483648
    %v681 = vmul.f32 %v680, 1.442695
    %v682 = vpow.pop %v681
    %v683 = vadd.f32 %v682, 1.0
    %v684 = vrcp.pop %v683
    %v685 = vmul.f32 1.0, %v684
    %v686 = vtanh.pop %v675
    %v687 = vmul.f32 %v685, %v624
    %689 = vrot.lane.b32.xlu0 %v686, 32
    %v690 = vpop.permute.xlu0 %689
    %v692 = vmul.f32 %v685, %v690
    %694 = vrot.lane.b32.xlu0 %v692, 32
    %v695 = vpop.permute.xlu0 %694
    %v697 = vadd.f32 %v687, %v695
    %v698 = vtanh.pop %v697
    %700 = vrot.lane.b32.xlu0 %v698, 32
    %v701 = vpop.permute.xlu0 %700
    %v703 = vmul.f32 %v685, %v701
    %v704 = vpack.c.bf16 %v703, %v703
    %v705 = vld [vmem:[%s295] sm:$0x1]
    %v706 = vunpack.c.l.bf16 %v705
    %708 = vrot.lane.b32.xlu0 %v704, 64
    %v709 = vpop.permute.xlu0 %708
    %v711 = vsel %vm479, %v709, 0
    %713 = vmatprep.subr.bf16.mxu0 0
    %714 = vmatpush1.bf16.msra.mxu0 %v475
    %715 = vmatprep.subr.bf16.mxu0 0
    %716 = vmatpush1.bf16.msra.mxu0 %v476
    %717 = vmatprep.subr.bf16.mxu0 0
    %718 = vmatpush1.bf16.msra.mxu0 0
    %719 = vmatprep.subr.bf16.mxu0 0
    %720 = vmatpush1.bf16.msra.mxu0 0
    %721 = vmatprep.subr.bf16.mxu0 0
    %722 = vmatpush1.bf16.msra.mxu0 0
    %723 = vmatprep.subr.bf16.mxu0 0
    %724 = vmatpush1.bf16.msra.mxu0 0
    %725 = vmatprep.subr.bf16.mxu0 0
    %726 = vmatpush1.bf16.msra.mxu0 0
    %727 = vmatprep.subr.bf16.mxu0 0
    %728 = vmatpush1.bf16.msra.mxu0 0
    %729 = vmatprep.subr.bf16.mxu0 0
    %730 = vmatpush1.bf16.msra.mxu0 0
    %731 = vmatprep.subr.bf16.mxu0 0
    %732 = vmatpush1.bf16.msra.mxu0 0
    %733 = vmatprep.subr.bf16.mxu0 0
    %734 = vmatpush1.bf16.msra.mxu0 0
    %735 = vmatprep.subr.bf16.mxu0 0
    %736 = vmatpush1.bf16.msra.mxu0 0
    %737 = vmatprep.subr.bf16.mxu0 0
    %738 = vmatpush1.bf16.msra.mxu0 0
    %739 = vmatprep.subr.bf16.mxu0 0
    %740 = vmatpush1.bf16.msra.mxu0 0
    %741 = vmatprep.subr.bf16.mxu0 0
    %742 = vmatpush1.bf16.msra.mxu0 0
    %743 = vmatprep.subr.bf16.mxu0 0
    %744 = vmatpush1.bf16.msra.mxu0 0
    %745 = vmatprep.mubr.bf16.mxu0 0
    %746 = vmatmul.mubr.bf16.gmra.mrb[0].mxu0 %v711
    %v747 = vpop.f32.mrb[0].mxu0
    %v748 = vadd.f32 %v706, %v747
    %v749 = vpop.f32.mrb[0].mxu0
    %v750 = vpop.f32.mrb[0].mxu0
    %v751 = vpop.f32.mrb[0].mxu0
    %752 = vdwg.mxu0
    %v753 = vxor.u32 %v748, 2147483648
    %v754 = vmul.f32 %v753, 1.442695
    %v755 = vpow.pop %v754
    %v756 = vadd.f32 %v755, 1.0
    %v757 = vrcp.pop %v756
    %v758 = vmul.f32 1.0, %v757
    %v759 = vtanh.pop %v748
    %v760 = vmul.f32 %v758, %v697
    %762 = vrot.lane.b32.xlu0 %v759, 32
    %v763 = vpop.permute.xlu0 %762
    %v765 = vmul.f32 %v758, %v763
    %767 = vrot.lane.b32.xlu0 %v765, 32
    %v768 = vpop.permute.xlu0 %767
    %v770 = vadd.f32 %v760, %v768
    %v771 = vtanh.pop %v770
    %773 = vrot.lane.b32.xlu0 %v771, 32
    %v774 = vpop.permute.xlu0 %773
    %v776 = vmul.f32 %v758, %v774
    %v777 = vpack.c.bf16 %v776, %v776
    %v778 = vld [vmem:[%s343] sm:$0x1]
    %v779 = vunpack.c.l.bf16 %v778
    %781 = vrot.lane.b32.xlu0 %v777, 64
    %v782 = vpop.permute.xlu0 %781
    %v784 = vsel %vm479, %v782, 0
    %786 = vmatprep.subr.bf16.mxu0 0
    %787 = vmatpush1.bf16.msra.mxu0 %v475
    %788 = vmatprep.subr.bf16.mxu0 0
    %789 = vmatpush1.bf16.msra.mxu0 %v476
    %790 = vmatprep.subr.bf16.mxu0 0
    %791 = vmatpush1.bf16.msra.mxu0 0
    %792 = vmatprep.subr.bf16.mxu0 0
    %793 = vmatpush1.bf16.msra.mxu0 0
    %794 = vmatprep.subr.bf16.mxu0 0
    %795 = vmatpush1.bf16.msra.mxu0 0
    %796 = vmatprep.subr.bf16.mxu0 0
    %797 = vmatpush1.bf16.msra.mxu0 0
    %798 = vmatprep.subr.bf16.mxu0 0
    %799 = vmatpush1.bf16.msra.mxu0 0
    %800 = vmatprep.subr.bf16.mxu0 0
    %801 = vmatpush1.bf16.msra.mxu0 0
    %802 = vmatprep.subr.bf16.mxu0 0
    %803 = vmatpush1.bf16.msra.mxu0 0
    %804 = vmatprep.subr.bf16.mxu0 0
    %805 = vmatpush1.bf16.msra.mxu0 0
    %806 = vmatprep.subr.bf16.mxu0 0
    %807 = vmatpush1.bf16.msra.mxu0 0
    %808 = vmatprep.subr.bf16.mxu0 0
    %809 = vmatpush1.bf16.msra.mxu0 0
    %810 = vmatprep.subr.bf16.mxu0 0
    %811 = vmatpush1.bf16.msra.mxu0 0
    %812 = vmatprep.subr.bf16.mxu0 0
    %813 = vmatpush1.bf16.msra.mxu0 0
    %814 = vmatprep.subr.bf16.mxu0 0
    %815 = vmatpush1.bf16.msra.mxu0 0
    %816 = vmatprep.subr.bf16.mxu0 0
    %817 = vmatpush1.bf16.msra.mxu0 0
    %818 = vmatprep.mubr.bf16.mxu0 0
    %819 = vmatmul.mubr.bf16.gmra.mrb[0].mxu0 %v784
    %v820 = vpop.f32.mrb[0].mxu0
    %v821 = vadd.f32 %v779, %v820
    %v822 = vpop.f32.mrb[0].mxu0
    %v823 = vpop.f32.mrb[0].mxu0
    %v824 = vpop.f32.mrb[0].mxu0
    %825 = vdwg.mxu0
    %v826 = vxor.u32 %v821, 2147483648
    %v827 = vmul.f32 %v826, 1.442695
    %v828 = vpow.pop %v827
    %v829 = vadd.f32 %v828, 1.0
    %v830 = vrcp.pop %v829
    %v831 = vmul.f32 1.0, %v830
    %v832 = vtanh.pop %v821
    %v833 = vmul.f32 %v831, %v770
    %835 = vrot.lane.b32.xlu0 %v832, 32
    %v836 = vpop.permute.xlu0 %835
    %v838 = vmul.f32 %v831, %v836
    %840 = vrot.lane.b32.xlu0 %v838, 32
    %v841 = vpop.permute.xlu0 %840
    %v843 = vadd.f32 %v833, %v841
    %v844 = vtanh.pop %v843
    %846 = vrot.lane.b32.xlu0 %v844, 32
    %v847 = vpop.permute.xlu0 %846
    %v849 = vmul.f32 %v831, %v847
    %v850 = vpack.c.bf16 %v849, %v849
    %v851 = vld [vmem:[%s391] sm:$0x1]
    %v852 = vunpack.c.l.bf16 %v851
    %854 = vrot.lane.b32.xlu0 %v850, 64
    %v855 = vpop.permute.xlu0 %854
    %v857 = vsel %vm479, %v855, 0
    %859 = vmatprep.subr.bf16.mxu0 0
    %860 = vmatpush1.bf16.msra.mxu0 %v475
    %861 = vmatprep.subr.bf16.mxu0 0
    %862 = vmatpush1.bf16.msra.mxu0 %v476
    %863 = vmatprep.subr.bf16.mxu0 0
    %864 = vmatpush1.bf16.msra.mxu0 0
    %865 = vmatprep.subr.bf16.mxu0 0
    %866 = vmatpush1.bf16.msra.mxu0 0
    %867 = vmatprep.subr.bf16.mxu0 0
    %868 = vmatpush1.bf16.msra.mxu0 0
    %869 = vmatprep.subr.bf16.mxu0 0
    %870 = vmatpush1.bf16.msra.mxu0 0
    %871 = vmatprep.subr.bf16.mxu0 0
    %872 = vmatpush1.bf16.msra.mxu0 0
    %873 = vmatprep.subr.bf16.mxu0 0
    %874 = vmatpush1.bf16.msra.mxu0 0
    %875 = vmatprep.subr.bf16.mxu0 0
    %876 = vmatpush1.bf16.msra.mxu0 0
    %877 = vmatprep.subr.bf16.mxu0 0
    %878 = vmatpush1.bf16.msra.mxu0 0
    %879 = vmatprep.subr.bf16.mxu0 0
    %880 = vmatpush1.bf16.msra.mxu0 0
    %881 = vmatprep.subr.bf16.mxu0 0
    %882 = vmatpush1.bf16.msra.mxu0 0
    %883 = vmatprep.subr.bf16.mxu0 0
    %884 = vmatpush1.bf16.msra.mxu0 0
    %885 = vmatprep.subr.bf16.mxu0 0
    %886 = vmatpush1.bf16.msra.mxu0 0
    %887 = vmatprep.subr.bf16.mxu0 0
    %888 = vmatpush1.bf16.msra.mxu0 0
    %889 = vmatprep.subr.bf16.mxu0 0
    %890 = vmatpush1.bf16.msra.mxu0 0
    %891 = vmatprep.mubr.bf16.mxu0 0
    %892 = vmatmul.mubr.bf16.gmra.mrb[0].mxu0 %v857
    %v893 = vpop.f32.mrb[0].mxu0
    %v894 = vadd.f32 %v852, %v893
    %v895 = vpop.f32.mrb[0].mxu0
    %v896 = vpop.f32.mrb[0].mxu0
    %v897 = vpop.f32.mrb[0].mxu0
    %898 = vdwg.mxu0
    %v899 = vxor.u32 %v894, 2147483648
    %v900 = vmul.f32 %v899, 1.442695
    %v901 = vpow.pop %v900
    %v902 = vadd.f32 %v901, 1.0
    %v903 = vrcp.pop %v902
    %v904 = vmul.f32 1.0, %v903
    %v905 = vtanh.pop %v894
    %v906 = vmul.f32 %v904, %v843
    %908 = vrot.lane.b32.xlu0 %v905, 32
    %v909 = vpop.permute.xlu0 %908
    %v911 = vmul.f32 %v904, %v909
    %913 = vrot.lane.b32.xlu0 %v911, 32
    %v914 = vpop.permute.xlu0 %913
    %v916 = vadd.f32 %v906, %v914
    %v917 = vtanh.pop %v916
    %919 = vrot.lane.b32.xlu0 %v917, 32
    %v920 = vpop.permute.xlu0 %919
    %v922 = vmul.f32 %v904, %v920
    %v923 = vpack.c.bf16 %v922, %v922
    %v924 = vld [vmem:[%s439] sm:$0x1]
    %v925 = vunpack.c.l.bf16 %v924
    %927 = vrot.lane.b32.xlu0 %v923, 64
    %v928 = vpop.permute.xlu0 %927
    %v930 = vsel %vm479, %v928, 0
    %932 = vmatprep.subr.bf16.mxu0 0
    %933 = vmatpush1.bf16.msra.mxu0 %v475
    %934 = vmatprep.subr.bf16.mxu0 0
    %935 = vmatpush1.bf16.msra.mxu0 %v476
    %936 = vmatprep.subr.bf16.mxu0 0
    %937 = vmatpush1.bf16.msra.mxu0 0
    %938 = vmatprep.subr.bf16.mxu0 0
    %939 = vmatpush1.bf16.msra.mxu0 0
    %940 = vmatprep.subr.bf16.mxu0 0
    %941 = vmatpush1.bf16.msra.mxu0 0
    %942 = vmatprep.subr.bf16.mxu0 0
    %943 = vmatpush1.bf16.msra.mxu0 0
    %944 = vmatprep.subr.bf16.mxu0 0
    %945 = vmatpush1.bf16.msra.mxu0 0
    %946 = vmatprep.subr.bf16.mxu0 0
    %947 = vmatpush1.bf16.msra.mxu0 0
    %948 = vmatprep.subr.bf16.mxu0 0
    %949 = vmatpush1.bf16.msra.mxu0 0
    %950 = vmatprep.subr.bf16.mxu0 0
    %951 = vmatpush1.bf16.msra.mxu0 0
    %952 = vmatprep.subr.bf16.mxu0 0
    %953 = vmatpush1.bf16.msra.mxu0 0
    %954 = vmatprep.subr.bf16.mxu0 0
    %955 = vmatpush1.bf16.msra.mxu0 0
    %956 = vmatprep.subr.bf16.mxu0 0
    %957 = vmatpush1.bf16.msra.mxu0 0
    %958 = vmatprep.subr.bf16.mxu0 0
    %959 = vmatpush1.bf16.msra.mxu0 0
    %960 = vmatprep.subr.bf16.mxu0 0
    %961 = vmatpush1.bf16.msra.mxu0 0
    %962 = vmatprep.subr.bf16.mxu0 0
    %963 = vmatpush1.bf16.msra.mxu0 0
    %964 = vmatprep.mubr.bf16.mxu0 0
    %965 = vmatmul.mubr.bf16.gmra.mrb[0].mxu0 %v930
    %v966 = vpop.f32.mrb[0].mxu0
    %v967 = vadd.f32 %v925, %v966
    %v968 = vpop.f32.mrb[0].mxu0
    %v969 = vpop.f32.mrb[0].mxu0
    %v970 = vpop.f32.mrb[0].mxu0
    %971 = vdwg.mxu0
    %v972 = vxor.u32 %v967, 2147483648
    %v973 = vmul.f32 %v972, 1.442695
    %v974 = vpow.pop %v973
    %v975 = vadd.f32 %v974, 1.0
    %v976 = vrcp.pop %v975
    %v977 = vmul.f32 1.0, %v976
    %v978 = vtanh.pop %v967
    %v979 = vmul.f32 %v977, %v916
    %981 = vrot.lane.b32.xlu0 %v978, 32
    %v982 = vpop.permute.xlu0 %981
    %v984 = vmul.f32 %v977, %v982
    %986 = vrot.lane.b32.xlu0 %v984, 32
    %v987 = vpop.permute.xlu0 %986
    %v989 = vadd.f32 %v979, %v987
    %v990 = vtanh.pop %v989
    %992 = vrot.lane.b32.xlu0 %v990, 32
    %v993 = vpop.permute.xlu0 %992
    %v995 = vmul.f32 %v977, %v993
    %v996 = vpack.c.bf16 %v995, %v995
    %v997 = vld [vmem:[%s4] sm:$0xf]
    %v998 = vld [vmem:[%s4 + $0x4] sm:$0xf]
    %v999 = vld [vmem:[%s4 + $0x8] sm:$0xf]
    %v1000 = vld [vmem:[%s4 + $0xc] sm:$0xf]
    %v1001 = vld [vmem:[%s5] sm:$0x1]
    %v1003 = vlaneseq
    %v1004 = vshrl.u32 %v1003, 7
    %v1005 = vsub.s32 0, %v1004
    %v1006 = vrot.slane %v1001, %v1005
    %1009 = vrot.lane.b32.xlu0 %v996, 64
    %v1010 = vpop.permute.xlu0 %1009
    %v1015 = vunpack.c.l.b16 %v997
    %v1016 = vunpack.c.l.b16 %v998
    %v1017 = vunpack.c.l.b16 %v999
    %v1018 = vunpack.c.l.b16 %v1000
    %v1019 = vpack.c.b16 %v1016, %v1015
    %v1020 = vpack.c.b16 %v1018, %v1017
    %v1024 = vsel %vm479, %v1010, 0
    %1026 = vmatprep.subr.bf16.mxu0 0
    %1027 = vmatpush1.bf16.msra.mxu0 %v1019
    %1028 = vmatprep.subr.bf16.mxu0 0
    %1029 = vmatpush1.bf16.msra.mxu0 %v1020
    %1030 = vmatprep.subr.bf16.mxu0 0
    %1031 = vmatpush1.bf16.msra.mxu0 0
    %1032 = vmatprep.subr.bf16.mxu0 0
    %1033 = vmatpush1.bf16.msra.mxu0 0
    %1034 = vmatprep.subr.bf16.mxu0 0
    %1035 = vmatpush1.bf16.msra.mxu0 0
    %1036 = vmatprep.subr.bf16.mxu0 0
    %1037 = vmatpush1.bf16.msra.mxu0 0
    %1038 = vmatprep.subr.bf16.mxu0 0
    %1039 = vmatpush1.bf16.msra.mxu0 0
    %1040 = vmatprep.subr.bf16.mxu0 0
    %1041 = vmatpush1.bf16.msra.mxu0 0
    %1042 = vmatprep.subr.bf16.mxu0 0
    %1043 = vmatpush1.bf16.msra.mxu0 0
    %1044 = vmatprep.subr.bf16.mxu0 0
    %1045 = vmatpush1.bf16.msra.mxu0 0
    %1046 = vmatprep.subr.bf16.mxu0 0
    %1047 = vmatpush1.bf16.msra.mxu0 0
    %1048 = vmatprep.subr.bf16.mxu0 0
    %1049 = vmatpush1.bf16.msra.mxu0 0
    %1050 = vmatprep.subr.bf16.mxu0 0
    %1051 = vmatpush1.bf16.msra.mxu0 0
    %1052 = vmatprep.subr.bf16.mxu0 0
    %1053 = vmatpush1.bf16.msra.mxu0 0
    %1054 = vmatprep.subr.bf16.mxu0 0
    %1055 = vmatpush1.bf16.msra.mxu0 0
    %1056 = vmatprep.subr.bf16.mxu0 0
    %1057 = vmatpush1.bf16.msra.mxu0 0
    %1058 = vmatprep.mubr.bf16.mxu0 0
    %1059 = vmatmul.mubr.bf16.gmra.mrb[0].mxu0 %v1024
    %v1060 = vpop.f32.mrb[0].mxu0
    %v1061 = vadd.f32 %v1006, %v1060
    %v1062 = vpop.f32.mrb[0].mxu0
    %v1063 = vpop.f32.mrb[0].mxu0
    %v1064 = vpop.f32.mrb[0].mxu0
    %1065 = vdwg.mxu0
    %vm1066 = vcmask 25600
    %v1067 = vsel %vm1066, %v1061, -inf
    %1068 = vmax.xlane.f32.xlu0 %v1067
    %v1069 = vpop.xlane.xlu0 %1068
    %v1070 = vsub.f32 %v1061, %v1069
    %v1071 = vmul.f32 %v1070, 1.442695
    %v1072 = vpow.pop %v1071
    %v1073 = vsel %vm1066, %v1072, 0.0
    %1074 = vadd.xlane.f32.xlu0 %v1073
    %v1075 = vpop.xlane.xlu0 %1074
    %v1076 = vrcp.pop %v1075
    %v1077 = vmul.f32 %v1072, %v1076
    %1078 = vst.msk [vmem:[#allocation6] sm:$0x3] %vm1066, %v1077
    // Predicated region
    $region30: #{tpu_custom_call.1} parent=1 // pred_check
      _
    $region31: #{tpu_custom_call.1} parent=1 // pred_check_branch
      %1080 = sbr.rel (0) target = $region33
    $region32: #{tpu_custom_call.1} parent=1 // pred_region
      %s1082 = ssub.s32 32, 32
      %1083 = vsyncadd [#allocation5], %s1082
      %s1085 = sshll.u32 [#allocation6], 4
      %s1086 = int_to_ptr.vmem [resolvable:$true] %s1085
      %1088 = dma.vmem_to_hbm [thread:$0]  %s1086, 32, %s6, [#allocation5]
    $region33: #{tpu_custom_call.1} parent=1 // pred_fallthru
      _
    // Predicated region
    $region34: #{tpu_custom_call.1} parent=1 // pred_check
      _
    $region35: #{tpu_custom_call.1} parent=1 // pred_check_branch
      %1090 = sbr.rel (0) target = $region37
    $region36: #{tpu_custom_call.1} parent=1 // pred_region
      %1091 = dma.done [#allocation5], 32
    $region37: #{tpu_custom_call.1} parent=1 // pred_fallthru
      _
    %1092 = vsyncpa [#allocation4], 1
    %1093 = vsyncpa [#allocation5], 1

</llo_original>
